<compile_context>
chip_gen: v7x
topology: tpu7x:2x2x1
jax: 0.10.0
libtpu: 0.0.40
codegen_flags: <defaults>
</compile_context>

<pallas_src>
import jax
import jax.numpy as jnp
from jax import lax
from jax.experimental import pallas as pl
from jax.experimental.pallas import tpu as pltpu

D = 512            # feature width of TextMlp (fixed by the module)
MAX_TB = 512       # default cap on rows per grid step


def _round_up(n, m):
    return ((n + m - 1) // m) * m


# ---------------------------------------------------------------------------
# Kernel
# ---------------------------------------------------------------------------
def text_mlp_kernel(x_ref, w1_ref, b1_ref, w2_ref, b2_ref, o_ref):
    x = x_ref[...].astype(jnp.float32)                       # [TB, D]

    # F.normalize(x, p=2, dim=1): x * rsqrt(max(sum(x^2), eps^2))
    # == x / max(||x||_2, 1e-12).  rsqrt goes to the EUP slot.
    sumsq = jnp.sum(x * x, axis=-1, keepdims=True)           # [TB, 1]
    xn = x * lax.rsqrt(jnp.maximum(sumsq, 1e-24))

    # fc1 + ReLU  (weights pre-transposed to [in, out], bf16; f32 accumulation)
    h = jnp.dot(xn.astype(jnp.bfloat16), w1_ref[...],
                preferred_element_type=jnp.float32) + b1_ref[...]
    h = jnp.maximum(h, 0.0)

    # TODO(synk): Dropout(p=0.3) is identity in eval mode; train mode would need
    # pltpu.prng_seed + pltpu.prng_random_bits masking with 1/(1-p) scaling.

    # fc2 + tanh
    y = jnp.dot(h.astype(jnp.bfloat16), w2_ref[...],
                preferred_element_type=jnp.float32) + b2_ref[...]
    o_ref[...] = jnp.tanh(y).astype(o_ref.dtype)


# ---------------------------------------------------------------------------
# Parameter prep (one-time, at load) + wrapper
# ---------------------------------------------------------------------------
def prepare_textmlp_params(w1, b1, w2, b2):
    """One-time prep (call at parameter-load time, NOT per forward call):
    PyTorch [out, in] weights -> transposed [in, out] bf16; biases -> f32 [1, D]."""
    return (jnp.asarray(w1, jnp.float32).T.astype(jnp.bfloat16),
            jnp.asarray(b1, jnp.float32).reshape(1, -1),
            jnp.asarray(w2, jnp.float32).T.astype(jnp.bfloat16),
            jnp.asarray(b2, jnp.float32).reshape(1, -1))


def text_mlp(x, w1_t, b1, w2_t, b2, *, max_tb=MAX_TB):
    """x: [B, 512] (f32 or bf16); w*_t: [512, 512] already transposed (bf16
    preferred, via prepare_textmlp_params); b*: [512] or [1, 512]."""
    B, d = x.shape
    assert d == D

    # Trace-time no-ops when params came from prepare_textmlp_params().
    w1_t = w1_t if w1_t.dtype == jnp.bfloat16 else w1_t.astype(jnp.bfloat16)
    w2_t = w2_t if w2_t.dtype == jnp.bfloat16 else w2_t.astype(jnp.bfloat16)
    b1 = b1.reshape(1, D).astype(jnp.float32)
    b2 = b2.reshape(1, D).astype(jnp.float32)

    # Batch tile: aim for >= 2 grid steps (v7x megacore sharding of the
    # "parallel" axis), multiple of 8 sublanes, capped at max_tb.
    TB = max(8, min(max_tb, _round_up(pl.cdiv(B, 2), 8)))
    # Ragged tail handled by Pallas partial-block masking — no pad / slice.
    grid = (pl.cdiv(B, TB),)

    x_bytes = x.dtype.itemsize
    cost = pl.CostEstimate(
        flops=4 * B * D * D,                                  # two [B,D]x[D,D] matmuls
        transcendentals=B * D + B,                            # tanh + rsqrt
        bytes_accessed=2 * B * D * x_bytes + 2 * D * D * 2 + 2 * D * 4,
    )

    compiler_kwargs = dict(dimension_semantics=("parallel",))  # megacore batch axis
    if TB > 512:
        # Larger tiles (v5e/v6e per-step-overhead amortization) can exceed the
        # default scoped VMEM limit (16 MiB on v5e): double-buffered x/out
        # tiles + bf16 weights + headroom for the f32 h/y intermediates.
        est = 4 * (2 * TB * D * 4) + 4 * (D * D * 2) + (4 << 20)
        compiler_kwargs["vmem_limit_bytes"] = min(est, 64 << 20)  # <= v7x physical/TC

    return pl.pallas_call(
        text_mlp_kernel,
        out_shape=jax.ShapeDtypeStruct((B, D), x.dtype),      # dtype follows caller
        grid_spec=pltpu.PrefetchScalarGridSpec(
            num_scalar_prefetch=0,
            grid=grid,
            in_specs=[
                pl.BlockSpec((TB, D), lambda i: (i, 0)),   # x tile (streamed)
                pl.BlockSpec((D, D), lambda i: (0, 0)),    # W1^T bf16 (resident)
                pl.BlockSpec((1, D), lambda i: (0, 0)),    # b1
                pl.BlockSpec((D, D), lambda i: (0, 0)),    # W2^T bf16 (resident)
                pl.BlockSpec((1, D), lambda i: (0, 0)),    # b2
            ],
            out_specs=pl.BlockSpec((TB, D), lambda i: (i, 0)),
        ),
        compiler_params=pltpu.CompilerParams(**compiler_kwargs),
        cost_estimate=cost,
    )(x, w1_t, b1, w2_t, b2)


# ---------------------------------------------------------------------------
# Pure-JAX f32 reference of TextMlp forward (eval mode), PyTorch weight layout.
# ---------------------------------------------------------------------------
def reference(x, w1, b1, w2, b2):
    norm = jnp.sqrt(jnp.sum(x * x, axis=1, keepdims=True))
    xn = x / jnp.maximum(norm, 1e-12)
    h = jnp.maximum(xn @ w1.T + b1, 0.0)
    return jnp.tanh(h @ w2.T + b2)


if __name__ == "__main__":
    key = jax.random.PRNGKey(0)
    k_x, k_w1, k_b1, k_w2, k_b2, k_x2 = jax.random.split(key, 6)

    # PyTorch-Linear-style init: uniform(-1/sqrt(in), 1/sqrt(in)), W is [out, in].
    bound = 1.0 / jnp.sqrt(jnp.float32(D))
    w1 = jax.random.uniform(k_w1, (D, D), jnp.float32, -bound, bound)
    b1 = jax.random.uniform(k_b1, (D,), jnp.float32, -bound, bound)
    w2 = jax.random.uniform(k_w2, (D, D), jnp.float32, -bound, bound)
    b2 = jax.random.uniform(k_b2, (D,), jnp.float32, -bound, bound)

    # One-time parameter prep (transpose + bf16 cast happens here, not per call).
    w1_t, b1p, w2_t, b2p = prepare_textmlp_params(w1, b1, w2, b2)

    # Test 1: small batch, single grid step.
    B = 8
    x = jax.random.normal(k_x, (B, D), dtype=jnp.float32)
    out = jax.block_until_ready(text_mlp(x, w1_t, b1p, w2_t, b2p))
    ref = reference(x, w1, b1, w2, b2)
    assert out.shape == (B, D)
    # bf16 matmul operands (f32 accumulation) => relaxed tolerance vs f32 reference.
    assert jnp.allclose(out, ref, atol=1e-2, rtol=1e-2), "mismatch vs reference (B=8)"

    # Test 2: ragged batch -> multi-step grid with a partial final block
    # (exercises the no-pad path: TB=8, grid=(2,), last block has 5 valid rows).
    B2 = 13
    x2 = jax.random.normal(k_x2, (B2, D), dtype=jnp.float32)
    out2 = jax.block_until_ready(text_mlp(x2, w1_t, b1p, w2_t, b2p))
    ref2 = reference(x2, w1, b1, w2, b2)
    assert out2.shape == (B2, D)
    assert jnp.allclose(out2, ref2, atol=1e-2, rtol=1e-2), "mismatch vs reference (B=13)"

    print("KERNEL_OK")
</pallas_src>

<mosaic_0001>
module attributes {stable_mosaic.version = 11 : i64} {
  func.func @text_mlp_kernel(%arg0: i32, %arg1: memref<8x512xf32, #tpu.memory_space<vmem>>, %arg2: memref<512x512xbf16, #tpu.memory_space<vmem>>, %arg3: memref<1x512xf32, #tpu.memory_space<vmem>>, %arg4: memref<512x512xbf16, #tpu.memory_space<vmem>>, %arg5: memref<1x512xf32, #tpu.memory_space<vmem>>, %arg6: memref<8x512xf32, #tpu.memory_space<vmem>>) attributes {dimension_semantics = [#tpu.dimension_semantics<parallel>], iteration_bounds = array<i64: 1>, scalar_prefetch = 0 : i64, scratch_operands = 0 : i64, tpu.core_type = #tpu.core_type<tc>, window_params = [{transform_indices = @transform_0, window_bounds = array<i64: 8, 512>}, {pipeline_mode = #tpu.pipeline_mode<synchronous>, transform_indices = @transform_1, window_bounds = array<i64: 512, 512>}, {pipeline_mode = #tpu.pipeline_mode<synchronous>, transform_indices = @transform_2, window_bounds = array<i64: 1, 512>}, {pipeline_mode = #tpu.pipeline_mode<synchronous>, transform_indices = @transform_3, window_bounds = array<i64: 512, 512>}, {pipeline_mode = #tpu.pipeline_mode<synchronous>, transform_indices = @transform_4, window_bounds = array<i64: 1, 512>}, {transform_indices = @transform_5, window_bounds = array<i64: 8, 512>}]} {
    %c0 = arith.constant 0 : index
    %c0_0 = arith.constant 0 : index
    %0 = vector.load %arg1[%c0, %c0_0] : memref<8x512xf32, #tpu.memory_space<vmem>>, vector<8x512xf32>
    %1 = arith.mulf %0, %0 : vector<8x512xf32>
    %cst = arith.constant dense<0.000000e+00> : vector<8xf32>
    %2 = vector.multi_reduction <add>, %1, %cst [1] : vector<8x512xf32> to vector<8xf32>
    %3 = vector.shape_cast %2 : vector<8xf32> to vector<8x1xf32>
    %cst_1 = arith.constant 1.000000e-24 : f32
    %4 = vector.broadcast %cst_1 : f32 to vector<8x1xf32>
    %5 = arith.maximumf %3, %4 : vector<8x1xf32>
    %6 = math.rsqrt %5 : vector<8x1xf32>
    %7 = vector.broadcast %6 : vector<8x1xf32> to vector<8x512xf32>
    %8 = arith.mulf %0, %7 : vector<8x512xf32>
    %9 = arith.truncf %8 : vector<8x512xf32> to vector<8x512xbf16>
    %c0_2 = arith.constant 0 : index
    %c0_3 = arith.constant 0 : index
    %10 = vector.load %arg2[%c0_2, %c0_3] : memref<512x512xbf16, #tpu.memory_space<vmem>>, vector<512x512xbf16>
    %cst_4 = arith.constant dense<0.000000e+00> : vector<8x512xf32>
    %11 = tpu.matmul %9, %10, %cst_4 {dimension_numbers = #tpu.dot_dimension_numbers<[1], [0], [0], [1], [0, 0, 1, 1], [], []>} : vector<8x512xbf16>, vector<512x512xbf16>, vector<8x512xf32> -> vector<8x512xf32>
    %c0_5 = arith.constant 0 : index
    %c0_6 = arith.constant 0 : index
    %12 = vector.load %arg3[%c0_5, %c0_6] : memref<1x512xf32, #tpu.memory_space<vmem>>, vector<1x512xf32>
    %13 = vector.broadcast %12 : vector<1x512xf32> to vector<8x512xf32>
    %14 = arith.addf %11, %13 : vector<8x512xf32>
    %cst_7 = arith.constant 0.000000e+00 : f32
    %15 = vector.broadcast %cst_7 : f32 to vector<8x512xf32>
    %16 = arith.maximumf %14, %15 : vector<8x512xf32>
    %17 = arith.truncf %16 : vector<8x512xf32> to vector<8x512xbf16>
    %c0_8 = arith.constant 0 : index
    %c0_9 = arith.constant 0 : index
    %18 = vector.load %arg4[%c0_8, %c0_9] : memref<512x512xbf16, #tpu.memory_space<vmem>>, vector<512x512xbf16>
    %cst_10 = arith.constant dense<0.000000e+00> : vector<8x512xf32>
    %19 = tpu.matmul %17, %18, %cst_10 {dimension_numbers = #tpu.dot_dimension_numbers<[1], [0], [0], [1], [0, 0, 1, 1], [], []>} : vector<8x512xbf16>, vector<512x512xbf16>, vector<8x512xf32> -> vector<8x512xf32>
    %c0_11 = arith.constant 0 : index
    %c0_12 = arith.constant 0 : index
    %20 = vector.load %arg5[%c0_11, %c0_12] : memref<1x512xf32, #tpu.memory_space<vmem>>, vector<1x512xf32>
    %21 = vector.broadcast %20 : vector<1x512xf32> to vector<8x512xf32>
    %22 = arith.addf %19, %21 : vector<8x512xf32>
    %23 = math.tanh %22 : vector<8x512xf32>
    %c0_13 = arith.constant 0 : index
    %c0_14 = arith.constant 0 : index
    %24 = vector.load %arg6[%c0_13, %c0_14] : memref<8x512xf32, #tpu.memory_space<vmem>>, vector<8x512xf32>
    tpu.vector_store %arg6[%c0_13, %c0_14], %23 {strides = array<i32>} : memref<8x512xf32, #tpu.memory_space<vmem>>, vector<8x512xf32>,
    return
  }
  func.func @transform_0(%arg0: i32) -> (i32, i32) {
    %c0_i32 = arith.constant 0 : i32
    %c0_i32_0 = arith.constant 0 : i32
    return %arg0, %c0_i32 : i32, i32
  }
  func.func @transform_1(%arg0: i32) -> (i32, i32) {
    %c0_i32 = arith.constant 0 : i32
    %c0_i32_0 = arith.constant 0 : i32
    %c0_i32_1 = arith.constant 0 : i32
    return %c0_i32, %c0_i32_0 : i32, i32
  }
  func.func @transform_2(%arg0: i32) -> (i32, i32) {
    %c0_i32 = arith.constant 0 : i32
    %c0_i32_0 = arith.constant 0 : i32
    %c0_i32_1 = arith.constant 0 : i32
    return %c0_i32, %c0_i32_0 : i32, i32
  }
  func.func @transform_3(%arg0: i32) -> (i32, i32) {
    %c0_i32 = arith.constant 0 : i32
    %c0_i32_0 = arith.constant 0 : i32
    %c0_i32_1 = arith.constant 0 : i32
    return %c0_i32, %c0_i32_0 : i32, i32
  }
  func.func @transform_4(%arg0: i32) -> (i32, i32) {
    %c0_i32 = arith.constant 0 : i32
    %c0_i32_0 = arith.constant 0 : i32
    %c0_i32_1 = arith.constant 0 : i32
    return %c0_i32, %c0_i32_0 : i32, i32
  }
  func.func @transform_5(%arg0: i32) -> (i32, i32) {
    %c0_i32 = arith.constant 0 : i32
    %c0_i32_0 = arith.constant 0 : i32
    return %arg0, %c0_i32 : i32, i32
  }
}

</mosaic_0001>

<llo_original>
// kernel: tpu_custom_call.1
$region0: #{tpu_custom_call.1}
  #allocation0 [shape = 'u32[]', space=smem, size = 0x4, offset = 0x4, fixed_abs, tag = 'smem constant byte address 0x4 - core index']
  #allocation1 [shape = 'u32[144,128]{1,0:T(1,128)}', space=vmem, size = 0x12000, scoped, tag = 'internal scratch']
  %s0 = inlined_call_operand.hbm [shape: f32[8,512], index: 0, kind: input, shape index: {}]
  %s1 = inlined_call_operand.hbm [shape: bf16[512,512], index: 1, kind: input, shape index: {}]
  %s2 = inlined_call_operand.vmem [shape: f32[1,512], index: 2, kind: input, shape index: {}]
  %s3 = inlined_call_operand.hbm [shape: bf16[512,512], index: 3, kind: input, shape index: {}]
  %s4 = inlined_call_operand.vmem [shape: f32[1,512], index: 4, kind: input, shape index: {}]
  %s5 = inlined_call_operand.hbm [shape: f32[8,512], index: 5, kind: output, shape index: {}]
  %s6 = sld [smem:[#allocation0]]
  $region42: #{tpu_custom_call.1} parent=0
    _
  %s8 = ssub.s32 1, %s6
  %s9 = scalar_select 0, %s8, %s6
  $region1: #{tpu_custom_call.1} parent=0
    #allocation2 [shape = 'u8[16384]{0}', space=vmem, size = 0x4000, scoped, tag = 'input window, operand 0, single buffered']
    #allocation3 [shape = 's32[1]{0}', space=sflag, size = 0x4, scoped, tag = 'scoped memory for tpu_custom_call.1']
    #allocation4 [shape = 's32[1]{0}', space=sflag, size = 0x4, scoped, tag = 'scoped memory for tpu_custom_call.1']
    #allocation5 [shape = 'u8[524288]{0}', space=vmem, size = 0x80000, scoped, tag = 'input window, operand 1, single buffered']
    #allocation6 [shape = 's32[1]{0}', space=sflag, size = 0x4, scoped, tag = 'scoped memory for tpu_custom_call.1']
    #allocation7 [shape = 'u8[524288]{0}', space=vmem, size = 0x80000, scoped, tag = 'input window, operand 3, single buffered']
    #allocation8 [shape = 'u8[16384]{0}', space=vmem, size = 0x4000, scoped, tag = 'output window, operand 0, single buffered']
    %10 = vsyncpa [#allocation3], 0
    %11 = vsyncpa [#allocation6], 0
    %12 = vsyncpa [#allocation4], 0
    // Predicated region
    $region2: #{tpu_custom_call.1} parent=1 // pred_check
      _
    $region3: #{tpu_custom_call.1} parent=1 // pred_check_branch
      %14 = sbr.rel (0) target = $region5
    $region4: #{tpu_custom_call.1} parent=1 // pred_region
      %s16 = ssub.s32 512, 512
      %17 = vsyncadd [#allocation3], %s16
      %s19 = sshll.u32 [#allocation2], 4
      %s20 = int_to_ptr.vmem [resolvable:$true] %s19
      %22 = dma.hbm_to_vmem [thread:$0]  %s0, 512, %s20, [#allocation3]
    $region5: #{tpu_custom_call.1} parent=1 // pred_fallthru
      _
    // Predicated region
    $region6: #{tpu_custom_call.1} parent=1 // pred_check
      _
    $region7: #{tpu_custom_call.1} parent=1 // pred_check_branch
      %24 = sbr.rel (0) target = $region9
    $region8: #{tpu_custom_call.1} parent=1 // pred_region
      %s26 = ssub.s32 16384, 16384
      %27 = vsyncadd [#allocation6], %s26
      %s28 = sshll.u32 [#allocation5], 4
      %s29 = int_to_ptr.vmem [resolvable:$true] %s28
      %34 = dma.hbm_to_vmem [thread:$0]  %s1, 16384, %s29, [#allocation6], 256, 256, 16
    $region9: #{tpu_custom_call.1} parent=1 // pred_fallthru
      _
    // Predicated region
    $region10: #{tpu_custom_call.1} parent=1 // pred_check
      _
    $region11: #{tpu_custom_call.1} parent=1 // pred_check_branch
      %36 = sbr.rel (0) target = $region13
    $region12: #{tpu_custom_call.1} parent=1 // pred_region
      _
    $region13: #{tpu_custom_call.1} parent=1 // pred_fallthru
      _
    // Predicated region
    $region14: #{tpu_custom_call.1} parent=1 // pred_check
      _
    $region15: #{tpu_custom_call.1} parent=1 // pred_check_branch
      %38 = sbr.rel (0) target = $region17
    $region16: #{tpu_custom_call.1} parent=1 // pred_region
      %s40 = ssub.s32 16384, 16384
      %41 = vsyncadd [#allocation6], %s40
      %s42 = sshll.u32 [#allocation7], 4
      %s43 = int_to_ptr.vmem [resolvable:$true] %s42
      %48 = dma.hbm_to_vmem [thread:$0]  %s3, 16384, %s43, [#allocation6], 256, 256, 16
    $region17: #{tpu_custom_call.1} parent=1 // pred_fallthru
      _
    // Predicated region
    $region18: #{tpu_custom_call.1} parent=1 // pred_check
      _
    $region19: #{tpu_custom_call.1} parent=1 // pred_check_branch
      %50 = sbr.rel (0) target = $region21
    $region20: #{tpu_custom_call.1} parent=1 // pred_region
      _
    $region21: #{tpu_custom_call.1} parent=1 // pred_fallthru
      _
    // Predicated region
    $region22: #{tpu_custom_call.1} parent=1 // pred_check
      _
    $region23: #{tpu_custom_call.1} parent=1 // pred_check_branch
      %52 = sbr.rel (0) target = $region25
    $region24: #{tpu_custom_call.1} parent=1 // pred_region
      %53 = dma.done [#allocation3], 512
    $region25: #{tpu_custom_call.1} parent=1 // pred_fallthru
      _
    // Predicated region
    $region26: #{tpu_custom_call.1} parent=1 // pred_check
      _
    $region27: #{tpu_custom_call.1} parent=1 // pred_check_branch
      %55 = sbr.rel (0) target = $region29
    $region28: #{tpu_custom_call.1} parent=1 // pred_region
      %56 = dma.done [#allocation6], 16384
    $region29: #{tpu_custom_call.1} parent=1 // pred_fallthru
      _
    // Predicated region
    $region30: #{tpu_custom_call.1} parent=1 // pred_check
      _
    $region31: #{tpu_custom_call.1} parent=1 // pred_check_branch
      %58 = sbr.rel (0) target = $region33
    $region32: #{tpu_custom_call.1} parent=1 // pred_region
      %59 = dma.done [#allocation6], 16384
    $region33: #{tpu_custom_call.1} parent=1 // pred_fallthru
      _
    %v60 = vld [vmem:[#allocation2] sm:$0xff]
    %v61 = vld [vmem:[#allocation2 + $0x8] sm:$0xff]
    %v62 = vld [vmem:[#allocation2 + $0x10] sm:$0xff]
    %v63 = vld [vmem:[#allocation2 + $0x18] sm:$0xff]
    %v64 = vmul.f32 %v60, %v60
    %v65 = vmul.f32 %v61, %v61
    %v66 = vmul.f32 %v62, %v62
    %v67 = vmul.f32 %v63, %v63
    %v68 = vadd.f32 %v64, %v65
    %v69 = vadd.f32 %v68, %v66
    %v70 = vadd.f32 %v69, %v67
    %71 = vadd.xlane.f32.xlu0 %v70
    %v72 = vpop.xlane.xlu0 %71
    %v73 = vmax.f32 %v72, 1e-24
    %v74 = vrsqrt.pop %v73
    %v75 = vmul.f32 %v60, %v74
    %v76 = vmul.f32 %v61, %v74
    %v77 = vmul.f32 %v62, %v74
    %v78 = vmul.f32 %v63, %v74
    %v79 = vpack.c.bf16 %v75, %v75
    %v80 = vpack.c.bf16 %v76, %v76
    %v81 = vpack.c.bf16 %v77, %v77
    %v82 = vpack.c.bf16 %v78, %v78
    %v83 = vld [vmem:[#allocation5] sm:$0xff]
    %v84 = vld [vmem:[#allocation5 + $0x8] sm:$0xff]
    %v85 = vld [vmem:[#allocation5 + $0x10] sm:$0xff]
    %v86 = vld [vmem:[#allocation5 + $0x18] sm:$0xff]
    %v87 = vld [vmem:[#allocation5 + $0x20] sm:$0xff]
    %v88 = vld [vmem:[#allocation5 + $0x28] sm:$0xff]
    %v89 = vld [vmem:[#allocation5 + $0x30] sm:$0xff]
    %v90 = vld [vmem:[#allocation5 + $0x38] sm:$0xff]
    %v91 = vld [vmem:[#allocation5 + $0x40] sm:$0xff]
    %v92 = vld [vmem:[#allocation5 + $0x48] sm:$0xff]
    %v93 = vld [vmem:[#allocation5 + $0x50] sm:$0xff]
    %v94 = vld [vmem:[#allocation5 + $0x58] sm:$0xff]
    %v95 = vld [vmem:[#allocation5 + $0x60] sm:$0xff]
    %v96 = vld [vmem:[#allocation5 + $0x68] sm:$0xff]
    %v97 = vld [vmem:[#allocation5 + $0x70] sm:$0xff]
    %v98 = vld [vmem:[#allocation5 + $0x78] sm:$0xff]
    %v99 = vld [vmem:[#allocation5 + $0x80] sm:$0xff]
    %v100 = vld [vmem:[#allocation5 + $0x88] sm:$0xff]
    %v101 = vld [vmem:[#allocation5 + $0x90] sm:$0xff]
    %v102 = vld [vmem:[#allocation5 + $0x98] sm:$0xff]
    %v103 = vld [vmem:[#allocation5 + $0xa0] sm:$0xff]
    %v104 = vld [vmem:[#allocation5 + $0xa8] sm:$0xff]
    %v105 = vld [vmem:[#allocation5 + $0xb0] sm:$0xff]
    %v106 = vld [vmem:[#allocation5 + $0xb8] sm:$0xff]
    %v107 = vld [vmem:[#allocation5 + $0xc0] sm:$0xff]
    %v108 = vld [vmem:[#allocation5 + $0xc8] sm:$0xff]
    %v109 = vld [vmem:[#allocation5 + $0xd0] sm:$0xff]
    %v110 = vld [vmem:[#allocation5 + $0xd8] sm:$0xff]
    %v111 = vld [vmem:[#allocation5 + $0xe0] sm:$0xff]
    %v112 = vld [vmem:[#allocation5 + $0xe8] sm:$0xff]
    %v113 = vld [vmem:[#allocation5 + $0xf0] sm:$0xff]
    %v114 = vld [vmem:[#allocation5 + $0xf8] sm:$0xff]
    %v115 = vld [vmem:[#allocation5 + $0x100] sm:$0xff]
    %v116 = vld [vmem:[#allocation5 + $0x108] sm:$0xff]
    %v117 = vld [vmem:[#allocation5 + $0x110] sm:$0xff]
    %v118 = vld [vmem:[#allocation5 + $0x118] sm:$0xff]
    %v119 = vld [vmem:[#allocation5 + $0x120] sm:$0xff]
    %v120 = vld [vmem:[#allocation5 + $0x128] sm:$0xff]
    %v121 = vld [vmem:[#allocation5 + $0x130] sm:$0xff]
    %v122 = vld [vmem:[#allocation5 + $0x138] sm:$0xff]
    %v123 = vld [vmem:[#allocation5 + $0x140] sm:$0xff]
    %v124 = vld [vmem:[#allocation5 + $0x148] sm:$0xff]
    %v125 = vld [vmem:[#allocation5 + $0x150] sm:$0xff]
    %v126 = vld [vmem:[#allocation5 + $0x158] sm:$0xff]
    %v127 = vld [vmem:[#allocation5 + $0x160] sm:$0xff]
    %v128 = vld [vmem:[#allocation5 + $0x168] sm:$0xff]
    %v129 = vld [vmem:[#allocation5 + $0x170] sm:$0xff]
    %v130 = vld [vmem:[#allocation5 + $0x178] sm:$0xff]
    %v131 = vld [vmem:[#allocation5 + $0x180] sm:$0xff]
    %v132 = vld [vmem:[#allocation5 + $0x188] sm:$0xff]
    %v133 = vld [vmem:[#allocation5 + $0x190] sm:$0xff]
    %v134 = vld [vmem:[#allocation5 + $0x198] sm:$0xff]
    %v135 = vld [vmem:[#allocation5 + $0x1a0] sm:$0xff]
    %v136 = vld [vmem:[#allocation5 + $0x1a8] sm:$0xff]
    %v137 = vld [vmem:[#allocation5 + $0x1b0] sm:$0xff]
    %v138 = vld [vmem:[#allocation5 + $0x1b8] sm:$0xff]
    %v139 = vld [vmem:[#allocation5 + $0x1c0] sm:$0xff]
    %v140 = vld [vmem:[#allocation5 + $0x1c8] sm:$0xff]
    %v141 = vld [vmem:[#allocation5 + $0x1d0] sm:$0xff]
    %v142 = vld [vmem:[#allocation5 + $0x1d8] sm:$0xff]
    %v143 = vld [vmem:[#allocation5 + $0x1e0] sm:$0xff]
    %v144 = vld [vmem:[#allocation5 + $0x1e8] sm:$0xff]
    %v145 = vld [vmem:[#allocation5 + $0x1f0] sm:$0xff]
    %v146 = vld [vmem:[#allocation5 + $0x1f8] sm:$0xff]
    %v147 = vld [vmem:[#allocation5 + $0x200] sm:$0xff]
    %v148 = vld [vmem:[#allocation5 + $0x208] sm:$0xff]
    %v149 = vld [vmem:[#allocation5 + $0x210] sm:$0xff]
    %v150 = vld [vmem:[#allocation5 + $0x218] sm:$0xff]
    %v151 = vld [vmem:[#allocation5 + $0x220] sm:$0xff]
    %v152 = vld [vmem:[#allocation5 + $0x228] sm:$0xff]
    %v153 = vld [vmem:[#allocation5 + $0x230] sm:$0xff]
    %v154 = vld [vmem:[#allocation5 + $0x238] sm:$0xff]
    %v155 = vld [vmem:[#allocation5 + $0x240] sm:$0xff]
    %v156 = vld [vmem:[#allocation5 + $0x248] sm:$0xff]
    %v157 = vld [vmem:[#allocation5 + $0x250] sm:$0xff]
    %v158 = vld [vmem:[#allocation5 + $0x258] sm:$0xff]
    %v159 = vld [vmem:[#allocation5 + $0x260] sm:$0xff]
    %v160 = vld [vmem:[#allocation5 + $0x268] sm:$0xff]
    %v161 = vld [vmem:[#allocation5 + $0x270] sm:$0xff]
    %v162 = vld [vmem:[#allocation5 + $0x278] sm:$0xff]
    %v163 = vld [vmem:[#allocation5 + $0x280] sm:$0xff]
    %v164 = vld [vmem:[#allocation5 + $0x288] sm:$0xff]
    %v165 = vld [vmem:[#allocation5 + $0x290] sm:$0xff]
    %v166 = vld [vmem:[#allocation5 + $0x298] sm:$0xff]
    %v167 = vld [vmem:[#allocation5 + $0x2a0] sm:$0xff]
    %v168 = vld [vmem:[#allocation5 + $0x2a8] sm:$0xff]
    %v169 = vld [vmem:[#allocation5 + $0x2b0] sm:$0xff]
    %v170 = vld [vmem:[#allocation5 + $0x2b8] sm:$0xff]
    %v171 = vld [vmem:[#allocation5 + $0x2c0] sm:$0xff]
    %v172 = vld [vmem:[#allocation5 + $0x2c8] sm:$0xff]
    %v173 = vld [vmem:[#allocation5 + $0x2d0] sm:$0xff]
    %v174 = vld [vmem:[#allocation5 + $0x2d8] sm:$0xff]
    %v175 = vld [vmem:[#allocation5 + $0x2e0] sm:$0xff]
    %v176 = vld [vmem:[#allocation5 + $0x2e8] sm:$0xff]
    %v177 = vld [vmem:[#allocation5 + $0x2f0] sm:$0xff]
    %v178 = vld [vmem:[#allocation5 + $0x2f8] sm:$0xff]
    %v179 = vld [vmem:[#allocation5 + $0x300] sm:$0xff]
    %v180 = vld [vmem:[#allocation5 + $0x308] sm:$0xff]
    %v181 = vld [vmem:[#allocation5 + $0x310] sm:$0xff]
    %v182 = vld [vmem:[#allocation5 + $0x318] sm:$0xff]
    %v183 = vld [vmem:[#allocation5 + $0x320] sm:$0xff]
    %v184 = vld [vmem:[#allocation5 + $0x328] sm:$0xff]
    %v185 = vld [vmem:[#allocation5 + $0x330] sm:$0xff]
    %v186 = vld [vmem:[#allocation5 + $0x338] sm:$0xff]
    %v187 = vld [vmem:[#allocation5 + $0x340] sm:$0xff]
    %v188 = vld [vmem:[#allocation5 + $0x348] sm:$0xff]
    %v189 = vld [vmem:[#allocation5 + $0x350] sm:$0xff]
    %v190 = vld [vmem:[#allocation5 + $0x358] sm:$0xff]
    %v191 = vld [vmem:[#allocation5 + $0x360] sm:$0xff]
    %v192 = vld [vmem:[#allocation5 + $0x368] sm:$0xff]
    %v193 = vld [vmem:[#allocation5 + $0x370] sm:$0xff]
    %v194 = vld [vmem:[#allocation5 + $0x378] sm:$0xff]
    %v195 = vld [vmem:[#allocation5 + $0x380] sm:$0xff]
    %v196 = vld [vmem:[#allocation5 + $0x388] sm:$0xff]
    %v197 = vld [vmem:[#allocation5 + $0x390] sm:$0xff]
    %v198 = vld [vmem:[#allocation5 + $0x398] sm:$0xff]
    %v199 = vld [vmem:[#allocation5 + $0x3a0] sm:$0xff]
    %v200 = vld [vmem:[#allocation5 + $0x3a8] sm:$0xff]
    %v201 = vld [vmem:[#allocation5 + $0x3b0] sm:$0xff]
    %v202 = vld [vmem:[#allocation5 + $0x3b8] sm:$0xff]
    %v203 = vld [vmem:[#allocation5 + $0x3c0] sm:$0xff]
    %v204 = vld [vmem:[#allocation5 + $0x3c8] sm:$0xff]
    %v205 = vld [vmem:[#allocation5 + $0x3d0] sm:$0xff]
    %v206 = vld [vmem:[#allocation5 + $0x3d8] sm:$0xff]
    %v207 = vld [vmem:[#allocation5 + $0x3e0] sm:$0xff]
    %v208 = vld [vmem:[#allocation5 + $0x3e8] sm:$0xff]
    %v209 = vld [vmem:[#allocation5 + $0x3f0] sm:$0xff]
    %v210 = vld [vmem:[#allocation5 + $0x3f8] sm:$0xff]
    %v211 = vld [vmem:[%s2] sm:$0xf]
    %v213 = vlaneseq
    %v214 = vshrl.u32 %v213, 7
    %v215 = vsub.s32 0, %v214
    %v216 = vrot.slane %v211, %v215
    %v217 = vlaneseq
    %v218 = vshrl.u32 %v217, 7
    %v219 = vsub.s32 1, %v218
    %v220 = vrot.slane %v211, %v219
    %v221 = vlaneseq
    %v222 = vshrl.u32 %v221, 7
    %v223 = vsub.s32 2, %v222
    %v224 = vrot.slane %v211, %v223
    %v225 = vlaneseq
    %v226 = vshrl.u32 %v225, 7
    %v227 = vsub.s32 3, %v226
    %v228 = vrot.slane %v211, %v227
    %v361 = vunpack.c.l.b16 %v83
    %v362 = vunpack.c.h.b16 %v83
    %v363 = vunpack.c.l.b16 %v84
    %v364 = vunpack.c.h.b16 %v84
    %v365 = vunpack.c.l.b16 %v85
    %v366 = vunpack.c.h.b16 %v85
    %v367 = vunpack.c.l.b16 %v86
    %v368 = vunpack.c.h.b16 %v86
    %v369 = vunpack.c.l.b16 %v87
    %v370 = vunpack.c.h.b16 %v87
    %v371 = vunpack.c.l.b16 %v88
    %v372 = vunpack.c.h.b16 %v88
    %v373 = vunpack.c.l.b16 %v89
    %v374 = vunpack.c.h.b16 %v89
    %v375 = vunpack.c.l.b16 %v90
    %v376 = vunpack.c.h.b16 %v90
    %v377 = vunpack.c.l.b16 %v91
    %v378 = vunpack.c.h.b16 %v91
    %v379 = vunpack.c.l.b16 %v92
    %v380 = vunpack.c.h.b16 %v92
    %v381 = vunpack.c.l.b16 %v93
    %v382 = vunpack.c.h.b16 %v93
    %v383 = vunpack.c.l.b16 %v94
    %v384 = vunpack.c.h.b16 %v94
    %v385 = vunpack.c.l.b16 %v95
    %v386 = vunpack.c.h.b16 %v95
    %v387 = vunpack.c.l.b16 %v96
    %v388 = vunpack.c.h.b16 %v96
    %v389 = vunpack.c.l.b16 %v97
    %v390 = vunpack.c.h.b16 %v97
    %v391 = vunpack.c.l.b16 %v98
    %v392 = vunpack.c.h.b16 %v98
    %v393 = vunpack.c.l.b16 %v99
    %v394 = vunpack.c.h.b16 %v99
    %v395 = vunpack.c.l.b16 %v100
    %v396 = vunpack.c.h.b16 %v100
    %v397 = vunpack.c.l.b16 %v101
    %v398 = vunpack.c.h.b16 %v101
    %v399 = vunpack.c.l.b16 %v102
    %v400 = vunpack.c.h.b16 %v102
    %v401 = vunpack.c.l.b16 %v103
    %v402 = vunpack.c.h.b16 %v103
    %v403 = vunpack.c.l.b16 %v104
    %v404 = vunpack.c.h.b16 %v104
    %v405 = vunpack.c.l.b16 %v105
    %v406 = vunpack.c.h.b16 %v105
    %v407 = vunpack.c.l.b16 %v106
    %v408 = vunpack.c.h.b16 %v106
    %v409 = vunpack.c.l.b16 %v107
    %v410 = vunpack.c.h.b16 %v107
    %v411 = vunpack.c.l.b16 %v108
    %v412 = vunpack.c.h.b16 %v108
    %v413 = vunpack.c.l.b16 %v109
    %v414 = vunpack.c.h.b16 %v109
    %v415 = vunpack.c.l.b16 %v110
    %v416 = vunpack.c.h.b16 %v110
    %v417 = vunpack.c.l.b16 %v111
    %v418 = vunpack.c.h.b16 %v111
    %v419 = vunpack.c.l.b16 %v112
    %v420 = vunpack.c.h.b16 %v112
    %v421 = vunpack.c.l.b16 %v113
    %v422 = vunpack.c.h.b16 %v113
    %v423 = vunpack.c.l.b16 %v114
    %v424 = vunpack.c.h.b16 %v114
    %v425 = vunpack.c.l.b16 %v115
    %v426 = vunpack.c.h.b16 %v115
    %v427 = vunpack.c.l.b16 %v116
    %v428 = vunpack.c.h.b16 %v116
    %v429 = vunpack.c.l.b16 %v117
    %v430 = vunpack.c.h.b16 %v117
    %v431 = vunpack.c.l.b16 %v118
    %v432 = vunpack.c.h.b16 %v118
    %v433 = vunpack.c.l.b16 %v119
    %v434 = vunpack.c.h.b16 %v119
    %v435 = vunpack.c.l.b16 %v120
    %v436 = vunpack.c.h.b16 %v120
    %v437 = vunpack.c.l.b16 %v121
    %v438 = vunpack.c.h.b16 %v121
    %v439 = vunpack.c.l.b16 %v122
    %v440 = vunpack.c.h.b16 %v122
    %v441 = vunpack.c.l.b16 %v123
    %v442 = vunpack.c.h.b16 %v123
    %v443 = vunpack.c.l.b16 %v124
    %v444 = vunpack.c.h.b16 %v124
    %v445 = vunpack.c.l.b16 %v125
    %v446 = vunpack.c.h.b16 %v125
    %v447 = vunpack.c.l.b16 %v126
    %v448 = vunpack.c.h.b16 %v126
    %v449 = vunpack.c.l.b16 %v127
    %v450 = vunpack.c.h.b16 %v127
    %v451 = vunpack.c.l.b16 %v128
    %v452 = vunpack.c.h.b16 %v128
    %v453 = vunpack.c.l.b16 %v129
    %v454 = vunpack.c.h.b16 %v129
    %v455 = vunpack.c.l.b16 %v130
    %v456 = vunpack.c.h.b16 %v130
    %v457 = vunpack.c.l.b16 %v131
    %v458 = vunpack.c.h.b16 %v131
    %v459 = vunpack.c.l.b16 %v132
    %v460 = vunpack.c.h.b16 %v132
    %v461 = vunpack.c.l.b16 %v133
    %v462 = vunpack.c.h.b16 %v133
    %v463 = vunpack.c.l.b16 %v134
    %v464 = vunpack.c.h.b16 %v134
    %v465 = vunpack.c.l.b16 %v135
    %v466 = vunpack.c.h.b16 %v135
    %v467 = vunpack.c.l.b16 %v136
    %v468 = vunpack.c.h.b16 %v136
    %v469 = vunpack.c.l.b16 %v137
    %v470 = vunpack.c.h.b16 %v137
    %v471 = vunpack.c.l.b16 %v138
    %v472 = vunpack.c.h.b16 %v138
    %v473 = vunpack.c.l.b16 %v139
    %v474 = vunpack.c.h.b16 %v139
    %v475 = vunpack.c.l.b16 %v140
    %v476 = vunpack.c.h.b16 %v140
    %v477 = vunpack.c.l.b16 %v141
    %v478 = vunpack.c.h.b16 %v141
    %v479 = vunpack.c.l.b16 %v142
    %v480 = vunpack.c.h.b16 %v142
    %v481 = vunpack.c.l.b16 %v143
    %v482 = vunpack.c.h.b16 %v143
    %v483 = vunpack.c.l.b16 %v144
    %v484 = vunpack.c.h.b16 %v144
    %v485 = vunpack.c.l.b16 %v145
    %v486 = vunpack.c.h.b16 %v145
    %v487 = vunpack.c.l.b16 %v146
    %v488 = vunpack.c.h.b16 %v146
    %v489 = vunpack.c.l.b16 %v147
    %v490 = vunpack.c.h.b16 %v147
    %v491 = vunpack.c.l.b16 %v148
    %v492 = vunpack.c.h.b16 %v148
    %v493 = vunpack.c.l.b16 %v149
    %v494 = vunpack.c.h.b16 %v149
    %v495 = vunpack.c.l.b16 %v150
    %v496 = vunpack.c.h.b16 %v150
    %v497 = vunpack.c.l.b16 %v151
    %v498 = vunpack.c.h.b16 %v151
    %v499 = vunpack.c.l.b16 %v152
    %v500 = vunpack.c.h.b16 %v152
    %v501 = vunpack.c.l.b16 %v153
    %v502 = vunpack.c.h.b16 %v153
    %v503 = vunpack.c.l.b16 %v154
    %v504 = vunpack.c.h.b16 %v154
    %v505 = vunpack.c.l.b16 %v155
    %v506 = vunpack.c.h.b16 %v155
    %v507 = vunpack.c.l.b16 %v156
    %v508 = vunpack.c.h.b16 %v156
    %v509 = vunpack.c.l.b16 %v157
    %v510 = vunpack.c.h.b16 %v157
    %v511 = vunpack.c.l.b16 %v158
    %v512 = vunpack.c.h.b16 %v158
    %v513 = vunpack.c.l.b16 %v159
    %v514 = vunpack.c.h.b16 %v159
    %v515 = vunpack.c.l.b16 %v160
    %v516 = vunpack.c.h.b16 %v160
    %v517 = vunpack.c.l.b16 %v161
    %v518 = vunpack.c.h.b16 %v161
    %v519 = vunpack.c.l.b16 %v162
    %v520 = vunpack.c.h.b16 %v162
    %v521 = vunpack.c.l.b16 %v163
    %v522 = vunpack.c.h.b16 %v163
    %v523 = vunpack.c.l.b16 %v164
    %v524 = vunpack.c.h.b16 %v164
    %v525 = vunpack.c.l.b16 %v165
    %v526 = vunpack.c.h.b16 %v165
    %v527 = vunpack.c.l.b16 %v166
    %v528 = vunpack.c.h.b16 %v166
    %v529 = vunpack.c.l.b16 %v167
    %v530 = vunpack.c.h.b16 %v167
    %v531 = vunpack.c.l.b16 %v168
    %v532 = vunpack.c.h.b16 %v168
    %v533 = vunpack.c.l.b16 %v169
    %v534 = vunpack.c.h.b16 %v169
    %v535 = vunpack.c.l.b16 %v170
    %v536 = vunpack.c.h.b16 %v170
    %v537 = vunpack.c.l.b16 %v171
    %v538 = vunpack.c.h.b16 %v171
    %v539 = vunpack.c.l.b16 %v172
    %v540 = vunpack.c.h.b16 %v172
    %v541 = vunpack.c.l.b16 %v173
    %v542 = vunpack.c.h.b16 %v173
    %v543 = vunpack.c.l.b16 %v174
    %v544 = vunpack.c.h.b16 %v174
    %v545 = vunpack.c.l.b16 %v175
    %v546 = vunpack.c.h.b16 %v175
    %v547 = vunpack.c.l.b16 %v176
    %v548 = vunpack.c.h.b16 %v176
    %v549 = vunpack.c.l.b16 %v177
    %v550 = vunpack.c.h.b16 %v177
    %v551 = vunpack.c.l.b16 %v178
    %v552 = vunpack.c.h.b16 %v178
    %v553 = vunpack.c.l.b16 %v179
    %v554 = vunpack.c.h.b16 %v179
    %v555 = vunpack.c.l.b16 %v180
    %v556 = vunpack.c.h.b16 %v180
    %v557 = vunpack.c.l.b16 %v181
    %v558 = vunpack.c.h.b16 %v181
    %v559 = vunpack.c.l.b16 %v182
    %v560 = vunpack.c.h.b16 %v182
    %v561 = vunpack.c.l.b16 %v183
    %v562 = vunpack.c.h.b16 %v183
    %v563 = vunpack.c.l.b16 %v184
    %v564 = vunpack.c.h.b16 %v184
    %v565 = vunpack.c.l.b16 %v185
    %v566 = vunpack.c.h.b16 %v185
    %v567 = vunpack.c.l.b16 %v186
    %v568 = vunpack.c.h.b16 %v186
    %v569 = vunpack.c.l.b16 %v187
    %v570 = vunpack.c.h.b16 %v187
    %v571 = vunpack.c.l.b16 %v188
    %v572 = vunpack.c.h.b16 %v188
    %v573 = vunpack.c.l.b16 %v189
    %v574 = vunpack.c.h.b16 %v189
    %v575 = vunpack.c.l.b16 %v190
    %v576 = vunpack.c.h.b16 %v190
    %v577 = vunpack.c.l.b16 %v191
    %v578 = vunpack.c.h.b16 %v191
    %v579 = vunpack.c.l.b16 %v192
    %v580 = vunpack.c.h.b16 %v192
    %v581 = vunpack.c.l.b16 %v193
    %v582 = vunpack.c.h.b16 %v193
    %v583 = vunpack.c.l.b16 %v194
    %v584 = vunpack.c.h.b16 %v194
    %v585 = vunpack.c.l.b16 %v195
    %v586 = vunpack.c.h.b16 %v195
    %v587 = vunpack.c.l.b16 %v196
    %v588 = vunpack.c.h.b16 %v196
    %v589 = vunpack.c.l.b16 %v197
    %v590 = vunpack.c.h.b16 %v197
    %v591 = vunpack.c.l.b16 %v198
    %v592 = vunpack.c.h.b16 %v198
    %v593 = vunpack.c.l.b16 %v199
    %v594 = vunpack.c.h.b16 %v199
    %v595 = vunpack.c.l.b16 %v200
    %v596 = vunpack.c.h.b16 %v200
    %v597 = vunpack.c.l.b16 %v201
    %v598 = vunpack.c.h.b16 %v201
    %v599 = vunpack.c.l.b16 %v202
    %v600 = vunpack.c.h.b16 %v202
    %v601 = vunpack.c.l.b16 %v203
    %v602 = vunpack.c.h.b16 %v203
    %v603 = vunpack.c.l.b16 %v204
    %v604 = vunpack.c.h.b16 %v204
    %v605 = vunpack.c.l.b16 %v205
    %v606 = vunpack.c.h.b16 %v205
    %v607 = vunpack.c.l.b16 %v206
    %v608 = vunpack.c.h.b16 %v206
    %v609 = vunpack.c.l.b16 %v207
    %v610 = vunpack.c.h.b16 %v207
    %v611 = vunpack.c.l.b16 %v208
    %v612 = vunpack.c.h.b16 %v208
    %v613 = vunpack.c.l.b16 %v209
    %v614 = vunpack.c.h.b16 %v209
    %v615 = vunpack.c.l.b16 %v210
    %v616 = vunpack.c.h.b16 %v210
    %v617 = vpack.c.b16 %v365, %v361
    %v618 = vpack.c.b16 %v366, %v362
    %v619 = vpack.c.b16 %v367, %v363
    %v620 = vpack.c.b16 %v368, %v364
    %v621 = vpack.c.b16 %v373, %v369
    %v622 = vpack.c.b16 %v374, %v370
    %v623 = vpack.c.b16 %v375, %v371
    %v624 = vpack.c.b16 %v376, %v372
    %v625 = vpack.c.b16 %v381, %v377
    %v626 = vpack.c.b16 %v382, %v378
    %v627 = vpack.c.b16 %v383, %v379
    %v628 = vpack.c.b16 %v384, %v380
    %v629 = vpack.c.b16 %v389, %v385
    %v630 = vpack.c.b16 %v390, %v386
    %v631 = vpack.c.b16 %v391, %v387
    %v632 = vpack.c.b16 %v392, %v388
    %v633 = vpack.c.b16 %v397, %v393
    %v634 = vpack.c.b16 %v398, %v394
    %v635 = vpack.c.b16 %v399, %v395
    %v636 = vpack.c.b16 %v400, %v396
    %v637 = vpack.c.b16 %v405, %v401
    %v638 = vpack.c.b16 %v406, %v402
    %v639 = vpack.c.b16 %v407, %v403
    %v640 = vpack.c.b16 %v408, %v404
    %v641 = vpack.c.b16 %v413, %v409
    %v642 = vpack.c.b16 %v414, %v410
    %v643 = vpack.c.b16 %v415, %v411
    %v644 = vpack.c.b16 %v416, %v412
    %v645 = vpack.c.b16 %v421, %v417
    %v646 = vpack.c.b16 %v422, %v418
    %v647 = vpack.c.b16 %v423, %v419
    %v648 = vpack.c.b16 %v424, %v420
    %v649 = vpack.c.b16 %v429, %v425
    %v650 = vpack.c.b16 %v430, %v426
    %v651 = vpack.c.b16 %v431, %v427
    %v652 = vpack.c.b16 %v432, %v428
    %v653 = vpack.c.b16 %v437, %v433
    %v654 = vpack.c.b16 %v438, %v434
    %v655 = vpack.c.b16 %v439, %v435
    %v656 = vpack.c.b16 %v440, %v436
    %v657 = vpack.c.b16 %v445, %v441
    %v658 = vpack.c.b16 %v446, %v442
    %v659 = vpack.c.b16 %v447, %v443
    %v660 = vpack.c.b16 %v448, %v444
    %v661 = vpack.c.b16 %v453, %v449
    %v662 = vpack.c.b16 %v454, %v450
    %v663 = vpack.c.b16 %v455, %v451
    %v664 = vpack.c.b16 %v456, %v452
    %v665 = vpack.c.b16 %v461, %v457
    %v666 = vpack.c.b16 %v462, %v458
    %v667 = vpack.c.b16 %v463, %v459
    %v668 = vpack.c.b16 %v464, %v460
    %v669 = vpack.c.b16 %v469, %v465
    %v670 = vpack.c.b16 %v470, %v466
    %v671 = vpack.c.b16 %v471, %v467
    %v672 = vpack.c.b16 %v472, %v468
    %v673 = vpack.c.b16 %v477, %v473
    %v674 = vpack.c.b16 %v478, %v474
    %v675 = vpack.c.b16 %v479, %v475
    %v676 = vpack.c.b16 %v480, %v476
    %v677 = vpack.c.b16 %v485, %v481
    %v678 = vpack.c.b16 %v486, %v482
    %v679 = vpack.c.b16 %v487, %v483
    %v680 = vpack.c.b16 %v488, %v484
    %v681 = vpack.c.b16 %v493, %v489
    %v682 = vpack.c.b16 %v494, %v490
    %v683 = vpack.c.b16 %v495, %v491
    %v684 = vpack.c.b16 %v496, %v492
    %v685 = vpack.c.b16 %v501, %v497
    %v686 = vpack.c.b16 %v502, %v498
    %v687 = vpack.c.b16 %v503, %v499
    %v688 = vpack.c.b16 %v504, %v500
    %v689 = vpack.c.b16 %v509, %v505
    %v690 = vpack.c.b16 %v510, %v506
    %v691 = vpack.c.b16 %v511, %v507
    %v692 = vpack.c.b16 %v512, %v508
    %v693 = vpack.c.b16 %v517, %v513
    %v694 = vpack.c.b16 %v518, %v514
    %v695 = vpack.c.b16 %v519, %v515
    %v696 = vpack.c.b16 %v520, %v516
    %v697 = vpack.c.b16 %v525, %v521
    %v698 = vpack.c.b16 %v526, %v522
    %v699 = vpack.c.b16 %v527, %v523
    %v700 = vpack.c.b16 %v528, %v524
    %v701 = vpack.c.b16 %v533, %v529
    %v702 = vpack.c.b16 %v534, %v530
    %v703 = vpack.c.b16 %v535, %v531
    %v704 = vpack.c.b16 %v536, %v532
    %v705 = vpack.c.b16 %v541, %v537
    %v706 = vpack.c.b16 %v542, %v538
    %v707 = vpack.c.b16 %v543, %v539
    %v708 = vpack.c.b16 %v544, %v540
    %v709 = vpack.c.b16 %v549, %v545
    %v710 = vpack.c.b16 %v550, %v546
    %v711 = vpack.c.b16 %v551, %v547
    %v712 = vpack.c.b16 %v552, %v548
    %v713 = vpack.c.b16 %v557, %v553
    %v714 = vpack.c.b16 %v558, %v554
    %v715 = vpack.c.b16 %v559, %v555
    %v716 = vpack.c.b16 %v560, %v556
    %v717 = vpack.c.b16 %v565, %v561
    %v718 = vpack.c.b16 %v566, %v562
    %v719 = vpack.c.b16 %v567, %v563
    %v720 = vpack.c.b16 %v568, %v564
    %v721 = vpack.c.b16 %v573, %v569
    %v722 = vpack.c.b16 %v574, %v570
    %v723 = vpack.c.b16 %v575, %v571
    %v724 = vpack.c.b16 %v576, %v572
    %v725 = vpack.c.b16 %v581, %v577
    %v726 = vpack.c.b16 %v582, %v578
    %v727 = vpack.c.b16 %v583, %v579
    %v728 = vpack.c.b16 %v584, %v580
    %v729 = vpack.c.b16 %v589, %v585
    %v730 = vpack.c.b16 %v590, %v586
    %v731 = vpack.c.b16 %v591, %v587
    %v732 = vpack.c.b16 %v592, %v588
    %v733 = vpack.c.b16 %v597, %v593
    %v734 = vpack.c.b16 %v598, %v594
    %v735 = vpack.c.b16 %v599, %v595
    %v736 = vpack.c.b16 %v600, %v596
    %v737 = vpack.c.b16 %v605, %v601
    %v738 = vpack.c.b16 %v606, %v602
    %v739 = vpack.c.b16 %v607, %v603
    %v740 = vpack.c.b16 %v608, %v604
    %v741 = vpack.c.b16 %v613, %v609
    %v742 = vpack.c.b16 %v614, %v610
    %v743 = vpack.c.b16 %v615, %v611
    %v744 = vpack.c.b16 %v616, %v612
    %873 = vmatprep.subr.bf16.mxu0 %v618
    %874 = vmatpush1.bf16.msra.mxu0 %v617
    %875 = vmatprep.subr.bf16.mxu0 %v622
    %876 = vmatpush1.bf16.msra.mxu0 %v621
    %877 = vmatprep.subr.bf16.mxu0 %v626
    %878 = vmatpush1.bf16.msra.mxu0 %v625
    %879 = vmatprep.subr.bf16.mxu0 %v630
    %880 = vmatpush1.bf16.msra.mxu0 %v629
    %881 = vmatprep.subr.bf16.mxu0 %v634
    %882 = vmatpush1.bf16.msra.mxu0 %v633
    %883 = vmatprep.subr.bf16.mxu0 %v638
    %884 = vmatpush1.bf16.msra.mxu0 %v637
    %885 = vmatprep.subr.bf16.mxu0 %v642
    %886 = vmatpush1.bf16.msra.mxu0 %v641
    %887 = vmatprep.subr.bf16.mxu0 %v646
    %888 = vmatpush1.bf16.msra.mxu0 %v645
    %889 = vmatprep.subr.bf16.mxu0 %v650
    %890 = vmatpush1.bf16.msra.mxu0 %v649
    %891 = vmatprep.subr.bf16.mxu0 %v654
    %892 = vmatpush1.bf16.msra.mxu0 %v653
    %893 = vmatprep.subr.bf16.mxu0 %v658
    %894 = vmatpush1.bf16.msra.mxu0 %v657
    %895 = vmatprep.subr.bf16.mxu0 %v662
    %896 = vmatpush1.bf16.msra.mxu0 %v661
    %897 = vmatprep.subr.bf16.mxu0 %v666
    %898 = vmatpush1.bf16.msra.mxu0 %v665
    %899 = vmatprep.subr.bf16.mxu0 %v670
    %900 = vmatpush1.bf16.msra.mxu0 %v669
    %901 = vmatprep.subr.bf16.mxu0 %v674
    %902 = vmatpush1.bf16.msra.mxu0 %v673
    %903 = vmatprep.subr.bf16.mxu0 %v678
    %904 = vmatpush1.bf16.msra.mxu0 %v677
    %905 = vmatprep.mubr.bf16.mxu0 %v80
    %906 = vmatmul.mubr.bf16.gmra.mrb[0].mxu0 %v79
    %v907 = vpop.f32.mrb[0].mxu0
    %v908 = vadd.f32 %v216, %v907
    %v909 = vpop.f32.mrb[0].mxu0
    %v910 = vadd.f32 %v220, %v909
    %v911 = vpop.f32.mrb[0].mxu0
    %v912 = vpop.f32.mrb[0].mxu0
    %913 = vdwg.mxu0
    %914 = vmatprep.subr.bf16.mxu0 %v682
    %915 = vmatpush1.bf16.msra.mxu0 %v681
    %916 = vmatprep.subr.bf16.mxu0 %v686
    %917 = vmatpush1.bf16.msra.mxu0 %v685
    %918 = vmatprep.subr.bf16.mxu0 %v690
    %919 = vmatpush1.bf16.msra.mxu0 %v689
    %920 = vmatprep.subr.bf16.mxu0 %v694
    %921 = vmatpush1.bf16.msra.mxu0 %v693
    %922 = vmatprep.subr.bf16.mxu0 %v698
    %923 = vmatpush1.bf16.msra.mxu0 %v697
    %924 = vmatprep.subr.bf16.mxu0 %v702
    %925 = vmatpush1.bf16.msra.mxu0 %v701
    %926 = vmatprep.subr.bf16.mxu0 %v706
    %927 = vmatpush1.bf16.msra.mxu0 %v705
    %928 = vmatprep.subr.bf16.mxu0 %v710
    %929 = vmatpush1.bf16.msra.mxu0 %v709
    %930 = vmatprep.subr.bf16.mxu0 %v714
    %931 = vmatpush1.bf16.msra.mxu0 %v713
    %932 = vmatprep.subr.bf16.mxu0 %v718
    %933 = vmatpush1.bf16.msra.mxu0 %v717
    %934 = vmatprep.subr.bf16.mxu0 %v722
    %935 = vmatpush1.bf16.msra.mxu0 %v721
    %936 = vmatprep.subr.bf16.mxu0 %v726
    %937 = vmatpush1.bf16.msra.mxu0 %v725
    %938 = vmatprep.subr.bf16.mxu0 %v730
    %939 = vmatpush1.bf16.msra.mxu0 %v729
    %940 = vmatprep.subr.bf16.mxu0 %v734
    %941 = vmatpush1.bf16.msra.mxu0 %v733
    %942 = vmatprep.subr.bf16.mxu0 %v738
    %943 = vmatpush1.bf16.msra.mxu0 %v737
    %944 = vmatprep.subr.bf16.mxu0 %v742
    %945 = vmatpush1.bf16.msra.mxu0 %v741
    %946 = vmatprep.mubr.bf16.mxu0 %v82
    %947 = vmatmul.mubr.bf16.gmra.mrb[0].mxu0 %v81
    %v948 = vpop.f32.mrb[0].mxu0
    %v949 = vadd.f32 %v908, %v948
    %v950 = vpop.f32.mrb[0].mxu0
    %v951 = vadd.f32 %v910, %v950
    %v952 = vpop.f32.mrb[0].mxu0
    %v953 = vpop.f32.mrb[0].mxu0
    %954 = vdwg.mxu0
    %955 = vmatprep.subr.bf16.mxu0 %v620
    %956 = vmatpush1.bf16.msra.mxu0 %v619
    %957 = vmatprep.subr.bf16.mxu0 %v624
    %958 = vmatpush1.bf16.msra.mxu0 %v623
    %959 = vmatprep.subr.bf16.mxu0 %v628
    %960 = vmatpush1.bf16.msra.mxu0 %v627
    %961 = vmatprep.subr.bf16.mxu0 %v632
    %962 = vmatpush1.bf16.msra.mxu0 %v631
    %963 = vmatprep.subr.bf16.mxu0 %v636
    %964 = vmatpush1.bf16.msra.mxu0 %v635
    %965 = vmatprep.subr.bf16.mxu0 %v640
    %966 = vmatpush1.bf16.msra.mxu0 %v639
    %967 = vmatprep.subr.bf16.mxu0 %v644
    %968 = vmatpush1.bf16.msra.mxu0 %v643
    %969 = vmatprep.subr.bf16.mxu0 %v648
    %970 = vmatpush1.bf16.msra.mxu0 %v647
    %971 = vmatprep.subr.bf16.mxu0 %v652
    %972 = vmatpush1.bf16.msra.mxu0 %v651
    %973 = vmatprep.subr.bf16.mxu0 %v656
    %974 = vmatpush1.bf16.msra.mxu0 %v655
    %975 = vmatprep.subr.bf16.mxu0 %v660
    %976 = vmatpush1.bf16.msra.mxu0 %v659
    %977 = vmatprep.subr.bf16.mxu0 %v664
    %978 = vmatpush1.bf16.msra.mxu0 %v663
    %979 = vmatprep.subr.bf16.mxu0 %v668
    %980 = vmatpush1.bf16.msra.mxu0 %v667
    %981 = vmatprep.subr.bf16.mxu0 %v672
    %982 = vmatpush1.bf16.msra.mxu0 %v671
    %983 = vmatprep.subr.bf16.mxu0 %v676
    %984 = vmatpush1.bf16.msra.mxu0 %v675
    %985 = vmatprep.subr.bf16.mxu0 %v680
    %986 = vmatpush1.bf16.msra.mxu0 %v679
    %987 = vmatprep.mubr.bf16.mxu0 %v80
    %988 = vmatmul.mubr.bf16.gmra.mrb[0].mxu0 %v79
    %v989 = vpop.f32.mrb[0].mxu0
    %v990 = vadd.f32 %v224, %v989
    %v991 = vpop.f32.mrb[0].mxu0
    %v992 = vadd.f32 %v228, %v991
    %v993 = vpop.f32.mrb[0].mxu0
    %v994 = vpop.f32.mrb[0].mxu0
    %995 = vdwg.mxu0
    %996 = vmatprep.subr.bf16.mxu0 %v684
    %997 = vmatpush1.bf16.msra.mxu0 %v683
    %998 = vmatprep.subr.bf16.mxu0 %v688
    %999 = vmatpush1.bf16.msra.mxu0 %v687
    %1000 = vmatprep.subr.bf16.mxu0 %v692
    %1001 = vmatpush1.bf16.msra.mxu0 %v691
    %1002 = vmatprep.subr.bf16.mxu0 %v696
    %1003 = vmatpush1.bf16.msra.mxu0 %v695
    %1004 = vmatprep.subr.bf16.mxu0 %v700
    %1005 = vmatpush1.bf16.msra.mxu0 %v699
    %1006 = vmatprep.subr.bf16.mxu0 %v704
    %1007 = vmatpush1.bf16.msra.mxu0 %v703
    %1008 = vmatprep.subr.bf16.mxu0 %v708
    %1009 = vmatpush1.bf16.msra.mxu0 %v707
    %1010 = vmatprep.subr.bf16.mxu0 %v712
    %1011 = vmatpush1.bf16.msra.mxu0 %v711
    %1012 = vmatprep.subr.bf16.mxu0 %v716
    %1013 = vmatpush1.bf16.msra.mxu0 %v715
    %1014 = vmatprep.subr.bf16.mxu0 %v720
    %1015 = vmatpush1.bf16.msra.mxu0 %v719
    %1016 = vmatprep.subr.bf16.mxu0 %v724
    %1017 = vmatpush1.bf16.msra.mxu0 %v723
    %1018 = vmatprep.subr.bf16.mxu0 %v728
    %1019 = vmatpush1.bf16.msra.mxu0 %v727
    %1020 = vmatprep.subr.bf16.mxu0 %v732
    %1021 = vmatpush1.bf16.msra.mxu0 %v731
    %1022 = vmatprep.subr.bf16.mxu0 %v736
    %1023 = vmatpush1.bf16.msra.mxu0 %v735
    %1024 = vmatprep.subr.bf16.mxu0 %v740
    %1025 = vmatpush1.bf16.msra.mxu0 %v739
    %1026 = vmatprep.subr.bf16.mxu0 %v744
    %1027 = vmatpush1.bf16.msra.mxu0 %v743
    %1028 = vmatprep.mubr.bf16.mxu0 %v82
    %1029 = vmatmul.mubr.bf16.gmra.mrb[0].mxu0 %v81
    %v1030 = vpop.f32.mrb[0].mxu0
    %v1031 = vadd.f32 %v990, %v1030
    %v1032 = vpop.f32.mrb[0].mxu0
    %v1033 = vadd.f32 %v992, %v1032
    %v1034 = vpop.f32.mrb[0].mxu0
    %v1035 = vpop.f32.mrb[0].mxu0
    %1036 = vdwg.mxu0
    %v1037 = vmax.f32 %v949, 0.0
    %v1038 = vmax.f32 %v951, 0.0
    %v1039 = vmax.f32 %v1031, 0.0
    %v1040 = vmax.f32 %v1033, 0.0
    %v1041 = vpack.c.bf16 %v1037, %v1037
    %v1042 = vpack.c.bf16 %v1038, %v1038
    %v1043 = vpack.c.bf16 %v1039, %v1039
    %v1044 = vpack.c.bf16 %v1040, %v1040
    %v1045 = vld [vmem:[#allocation7] sm:$0xff]
    %v1046 = vld [vmem:[#allocation7 + $0x8] sm:$0xff]
    %v1047 = vld [vmem:[#allocation7 + $0x10] sm:$0xff]
    %v1048 = vld [vmem:[#allocation7 + $0x18] sm:$0xff]
    %v1049 = vld [vmem:[#allocation7 + $0x20] sm:$0xff]
    %v1050 = vld [vmem:[#allocation7 + $0x28] sm:$0xff]
    %v1051 = vld [vmem:[#allocation7 + $0x30] sm:$0xff]
    %v1052 = vld [vmem:[#allocation7 + $0x38] sm:$0xff]
    %v1053 = vld [vmem:[#allocation7 + $0x40] sm:$0xff]
    %v1054 = vld [vmem:[#allocation7 + $0x48] sm:$0xff]
    %v1055 = vld [vmem:[#allocation7 + $0x50] sm:$0xff]
    %v1056 = vld [vmem:[#allocation7 + $0x58] sm:$0xff]
    %v1057 = vld [vmem:[#allocation7 + $0x60] sm:$0xff]
    %v1058 = vld [vmem:[#allocation7 + $0x68] sm:$0xff]
    %v1059 = vld [vmem:[#allocation7 + $0x70] sm:$0xff]
    %v1060 = vld [vmem:[#allocation7 + $0x78] sm:$0xff]
    %v1061 = vld [vmem:[#allocation7 + $0x80] sm:$0xff]
    %v1062 = vld [vmem:[#allocation7 + $0x88] sm:$0xff]
    %v1063 = vld [vmem:[#allocation7 + $0x90] sm:$0xff]
    %v1064 = vld [vmem:[#allocation7 + $0x98] sm:$0xff]
    %v1065 = vld [vmem:[#allocation7 + $0xa0] sm:$0xff]
    %v1066 = vld [vmem:[#allocation7 + $0xa8] sm:$0xff]
    %v1067 = vld [vmem:[#allocation7 + $0xb0] sm:$0xff]
    %v1068 = vld [vmem:[#allocation7 + $0xb8] sm:$0xff]
    %v1069 = vld [vmem:[#allocation7 + $0xc0] sm:$0xff]
    %v1070 = vld [vmem:[#allocation7 + $0xc8] sm:$0xff]
    %v1071 = vld [vmem:[#allocation7 + $0xd0] sm:$0xff]
    %v1072 = vld [vmem:[#allocation7 + $0xd8] sm:$0xff]
    %v1073 = vld [vmem:[#allocation7 + $0xe0] sm:$0xff]
    %v1074 = vld [vmem:[#allocation7 + $0xe8] sm:$0xff]
    %v1075 = vld [vmem:[#allocation7 + $0xf0] sm:$0xff]
    %v1076 = vld [vmem:[#allocation7 + $0xf8] sm:$0xff]
    %v1077 = vld [vmem:[#allocation7 + $0x100] sm:$0xff]
    %v1078 = vld [vmem:[#allocation7 + $0x108] sm:$0xff]
    %v1079 = vld [vmem:[#allocation7 + $0x110] sm:$0xff]
    %v1080 = vld [vmem:[#allocation7 + $0x118] sm:$0xff]
    %v1081 = vld [vmem:[#allocation7 + $0x120] sm:$0xff]
    %v1082 = vld [vmem:[#allocation7 + $0x128] sm:$0xff]
    %v1083 = vld [vmem:[#allocation7 + $0x130] sm:$0xff]
    %v1084 = vld [vmem:[#allocation7 + $0x138] sm:$0xff]
    %v1085 = vld [vmem:[#allocation7 + $0x140] sm:$0xff]
    %v1086 = vld [vmem:[#allocation7 + $0x148] sm:$0xff]
    %v1087 = vld [vmem:[#allocation7 + $0x150] sm:$0xff]
    %v1088 = vld [vmem:[#allocation7 + $0x158] sm:$0xff]
    %v1089 = vld [vmem:[#allocation7 + $0x160] sm:$0xff]
    %v1090 = vld [vmem:[#allocation7 + $0x168] sm:$0xff]
    %v1091 = vld [vmem:[#allocation7 + $0x170] sm:$0xff]
    %v1092 = vld [vmem:[#allocation7 + $0x178] sm:$0xff]
    %v1093 = vld [vmem:[#allocation7 + $0x180] sm:$0xff]
    %v1094 = vld [vmem:[#allocation7 + $0x188] sm:$0xff]
    %v1095 = vld [vmem:[#allocation7 + $0x190] sm:$0xff]
    %v1096 = vld [vmem:[#allocation7 + $0x198] sm:$0xff]
    %v1097 = vld [vmem:[#allocation7 + $0x1a0] sm:$0xff]
    %v1098 = vld [vmem:[#allocation7 + $0x1a8] sm:$0xff]
    %v1099 = vld [vmem:[#allocation7 + $0x1b0] sm:$0xff]
    %v1100 = vld [vmem:[#allocation7 + $0x1b8] sm:$0xff]
    %v1101 = vld [vmem:[#allocation7 + $0x1c0] sm:$0xff]
    %v1102 = vld [vmem:[#allocation7 + $0x1c8] sm:$0xff]
    %v1103 = vld [vmem:[#allocation7 + $0x1d0] sm:$0xff]
    %v1104 = vld [vmem:[#allocation7 + $0x1d8] sm:$0xff]
    %v1105 = vld [vmem:[#allocation7 + $0x1e0] sm:$0xff]
    %v1106 = vld [vmem:[#allocation7 + $0x1e8] sm:$0xff]
    %v1107 = vld [vmem:[#allocation7 + $0x1f0] sm:$0xff]
    %v1108 = vld [vmem:[#allocation7 + $0x1f8] sm:$0xff]
    %v1109 = vld [vmem:[#allocation7 + $0x200] sm:$0xff]
    %v1110 = vld [vmem:[#allocation7 + $0x208] sm:$0xff]
    %v1111 = vld [vmem:[#allocation7 + $0x210] sm:$0xff]
    %v1112 = vld [vmem:[#allocation7 + $0x218] sm:$0xff]
    %v1113 = vld [vmem:[#allocation7 + $0x220] sm:$0xff]
    %v1114 = vld [vmem:[#allocation7 + $0x228] sm:$0xff]
    %v1115 = vld [vmem:[#allocation7 + $0x230] sm:$0xff]
    %v1116 = vld [vmem:[#allocation7 + $0x238] sm:$0xff]
    %v1117 = vld [vmem:[#allocation7 + $0x240] sm:$0xff]
    %v1118 = vld [vmem:[#allocation7 + $0x248] sm:$0xff]
    %v1119 = vld [vmem:[#allocation7 + $0x250] sm:$0xff]
    %v1120 = vld [vmem:[#allocation7 + $0x258] sm:$0xff]
    %v1121 = vld [vmem:[#allocation7 + $0x260] sm:$0xff]
    %v1122 = vld [vmem:[#allocation7 + $0x268] sm:$0xff]
    %v1123 = vld [vmem:[#allocation7 + $0x270] sm:$0xff]
    %v1124 = vld [vmem:[#allocation7 + $0x278] sm:$0xff]
    %v1125 = vld [vmem:[#allocation7 + $0x280] sm:$0xff]
    %v1126 = vld [vmem:[#allocation7 + $0x288] sm:$0xff]
    %v1127 = vld [vmem:[#allocation7 + $0x290] sm:$0xff]
    %v1128 = vld [vmem:[#allocation7 + $0x298] sm:$0xff]
    %v1129 = vld [vmem:[#allocation7 + $0x2a0] sm:$0xff]
    %v1130 = vld [vmem:[#allocation7 + $0x2a8] sm:$0xff]
    %v1131 = vld [vmem:[#allocation7 + $0x2b0] sm:$0xff]
    %v1132 = vld [vmem:[#allocation7 + $0x2b8] sm:$0xff]
    %v1133 = vld [vmem:[#allocation7 + $0x2c0] sm:$0xff]
    %v1134 = vld [vmem:[#allocation7 + $0x2c8] sm:$0xff]
    %v1135 = vld [vmem:[#allocation7 + $0x2d0] sm:$0xff]
    %v1136 = vld [vmem:[#allocation7 + $0x2d8] sm:$0xff]
    %v1137 = vld [vmem:[#allocation7 + $0x2e0] sm:$0xff]
    %v1138 = vld [vmem:[#allocation7 + $0x2e8] sm:$0xff]
    %v1139 = vld [vmem:[#allocation7 + $0x2f0] sm:$0xff]
    %v1140 = vld [vmem:[#allocation7 + $0x2f8] sm:$0xff]
    %v1141 = vld [vmem:[#allocation7 + $0x300] sm:$0xff]
    %v1142 = vld [vmem:[#allocation7 + $0x308] sm:$0xff]
    %v1143 = vld [vmem:[#allocation7 + $0x310] sm:$0xff]
    %v1144 = vld [vmem:[#allocation7 + $0x318] sm:$0xff]
    %v1145 = vld [vmem:[#allocation7 + $0x320] sm:$0xff]
    %v1146 = vld [vmem:[#allocation7 + $0x328] sm:$0xff]
    %v1147 = vld [vmem:[#allocation7 + $0x330] sm:$0xff]
    %v1148 = vld [vmem:[#allocation7 + $0x338] sm:$0xff]
    %v1149 = vld [vmem:[#allocation7 + $0x340] sm:$0xff]
    %v1150 = vld [vmem:[#allocation7 + $0x348] sm:$0xff]
    %v1151 = vld [vmem:[#allocation7 + $0x350] sm:$0xff]
    %v1152 = vld [vmem:[#allocation7 + $0x358] sm:$0xff]
    %v1153 = vld [vmem:[#allocation7 + $0x360] sm:$0xff]
    %v1154 = vld [vmem:[#allocation7 + $0x368] sm:$0xff]
    %v1155 = vld [vmem:[#allocation7 + $0x370] sm:$0xff]
    %v1156 = vld [vmem:[#allocation7 + $0x378] sm:$0xff]
    %v1157 = vld [vmem:[#allocation7 + $0x380] sm:$0xff]
    %v1158 = vld [vmem:[#allocation7 + $0x388] sm:$0xff]
    %v1159 = vld [vmem:[#allocation7 + $0x390] sm:$0xff]
    %v1160 = vld [vmem:[#allocation7 + $0x398] sm:$0xff]
    %v1161 = vld [vmem:[#allocation7 + $0x3a0] sm:$0xff]
    %v1162 = vld [vmem:[#allocation7 + $0x3a8] sm:$0xff]
    %v1163 = vld [vmem:[#allocation7 + $0x3b0] sm:$0xff]
    %v1164 = vld [vmem:[#allocation7 + $0x3b8] sm:$0xff]
    %v1165 = vld [vmem:[#allocation7 + $0x3c0] sm:$0xff]
    %v1166 = vld [vmem:[#allocation7 + $0x3c8] sm:$0xff]
    %v1167 = vld [vmem:[#allocation7 + $0x3d0] sm:$0xff]
    %v1168 = vld [vmem:[#allocation7 + $0x3d8] sm:$0xff]
    %v1169 = vld [vmem:[#allocation7 + $0x3e0] sm:$0xff]
    %v1170 = vld [vmem:[#allocation7 + $0x3e8] sm:$0xff]
    %v1171 = vld [vmem:[#allocation7 + $0x3f0] sm:$0xff]
    %v1172 = vld [vmem:[#allocation7 + $0x3f8] sm:$0xff]
    %v1173 = vld [vmem:[%s4] sm:$0xf]
    %v1175 = vlaneseq
    %v1176 = vshrl.u32 %v1175, 7
    %v1177 = vsub.s32 0, %v1176
    %v1178 = vrot.slane %v1173, %v1177
    %v1179 = vlaneseq
    %v1180 = vshrl.u32 %v1179, 7
    %v1181 = vsub.s32 1, %v1180
    %v1182 = vrot.slane %v1173, %v1181
    %v1183 = vlaneseq
    %v1184 = vshrl.u32 %v1183, 7
    %v1185 = vsub.s32 2, %v1184
    %v1186 = vrot.slane %v1173, %v1185
    %v1187 = vlaneseq
    %v1188 = vshrl.u32 %v1187, 7
    %v1189 = vsub.s32 3, %v1188
    %v1190 = vrot.slane %v1173, %v1189
    %v1323 = vunpack.c.l.b16 %v1045
    %v1324 = vunpack.c.h.b16 %v1045
    %v1325 = vunpack.c.l.b16 %v1046
    %v1326 = vunpack.c.h.b16 %v1046
    %v1327 = vunpack.c.l.b16 %v1047
    %v1328 = vunpack.c.h.b16 %v1047
    %v1329 = vunpack.c.l.b16 %v1048
    %v1330 = vunpack.c.h.b16 %v1048
    %v1331 = vunpack.c.l.b16 %v1049
    %v1332 = vunpack.c.h.b16 %v1049
    %v1333 = vunpack.c.l.b16 %v1050
    %v1334 = vunpack.c.h.b16 %v1050
    %v1335 = vunpack.c.l.b16 %v1051
    %v1336 = vunpack.c.h.b16 %v1051
    %v1337 = vunpack.c.l.b16 %v1052
    %v1338 = vunpack.c.h.b16 %v1052
    %v1339 = vunpack.c.l.b16 %v1053
    %v1340 = vunpack.c.h.b16 %v1053
    %v1341 = vunpack.c.l.b16 %v1054
    %v1342 = vunpack.c.h.b16 %v1054
    %v1343 = vunpack.c.l.b16 %v1055
    %v1344 = vunpack.c.h.b16 %v1055
    %v1345 = vunpack.c.l.b16 %v1056
    %v1346 = vunpack.c.h.b16 %v1056
    %v1347 = vunpack.c.l.b16 %v1057
    %v1348 = vunpack.c.h.b16 %v1057
    %v1349 = vunpack.c.l.b16 %v1058
    %v1350 = vunpack.c.h.b16 %v1058
    %v1351 = vunpack.c.l.b16 %v1059
    %v1352 = vunpack.c.h.b16 %v1059
    %v1353 = vunpack.c.l.b16 %v1060
    %v1354 = vunpack.c.h.b16 %v1060
    %v1355 = vunpack.c.l.b16 %v1061
    %v1356 = vunpack.c.h.b16 %v1061
    %v1357 = vunpack.c.l.b16 %v1062
    %v1358 = vunpack.c.h.b16 %v1062
    %v1359 = vunpack.c.l.b16 %v1063
    %v1360 = vunpack.c.h.b16 %v1063
    %v1361 = vunpack.c.l.b16 %v1064
    %v1362 = vunpack.c.h.b16 %v1064
    %v1363 = vunpack.c.l.b16 %v1065
    %v1364 = vunpack.c.h.b16 %v1065
    %v1365 = vunpack.c.l.b16 %v1066
    %v1366 = vunpack.c.h.b16 %v1066
    %v1367 = vunpack.c.l.b16 %v1067
    %v1368 = vunpack.c.h.b16 %v1067
    %v1369 = vunpack.c.l.b16 %v1068
    %v1370 = vunpack.c.h.b16 %v1068
    %v1371 = vunpack.c.l.b16 %v1069
    %v1372 = vunpack.c.h.b16 %v1069
    %v1373 = vunpack.c.l.b16 %v1070
    %v1374 = vunpack.c.h.b16 %v1070
    %v1375 = vunpack.c.l.b16 %v1071
    %v1376 = vunpack.c.h.b16 %v1071
    %v1377 = vunpack.c.l.b16 %v1072
    %v1378 = vunpack.c.h.b16 %v1072
    %v1379 = vunpack.c.l.b16 %v1073
    %v1380 = vunpack.c.h.b16 %v1073
    %v1381 = vunpack.c.l.b16 %v1074
    %v1382 = vunpack.c.h.b16 %v1074
    %v1383 = vunpack.c.l.b16 %v1075
    %v1384 = vunpack.c.h.b16 %v1075
    %v1385 = vunpack.c.l.b16 %v1076
    %v1386 = vunpack.c.h.b16 %v1076
    %v1387 = vunpack.c.l.b16 %v1077
    %v1388 = vunpack.c.h.b16 %v1077
    %v1389 = vunpack.c.l.b16 %v1078
    %v1390 = vunpack.c.h.b16 %v1078
    %v1391 = vunpack.c.l.b16 %v1079
    %v1392 = vunpack.c.h.b16 %v1079
    %v1393 = vunpack.c.l.b16 %v1080
    %v1394 = vunpack.c.h.b16 %v1080
    %v1395 = vunpack.c.l.b16 %v1081
    %v1396 = vunpack.c.h.b16 %v1081
    %v1397 = vunpack.c.l.b16 %v1082
    %v1398 = vunpack.c.h.b16 %v1082
    %v1399 = vunpack.c.l.b16 %v1083
    %v1400 = vunpack.c.h.b16 %v1083
    %v1401 = vunpack.c.l.b16 %v1084
    %v1402 = vunpack.c.h.b16 %v1084
    %v1403 = vunpack.c.l.b16 %v1085
    %v1404 = vunpack.c.h.b16 %v1085
    %v1405 = vunpack.c.l.b16 %v1086
    %v1406 = vunpack.c.h.b16 %v1086
    %v1407 = vunpack.c.l.b16 %v1087
    %v1408 = vunpack.c.h.b16 %v1087
    %v1409 = vunpack.c.l.b16 %v1088
    %v1410 = vunpack.c.h.b16 %v1088
    %v1411 = vunpack.c.l.b16 %v1089
    %v1412 = vunpack.c.h.b16 %v1089
    %v1413 = vunpack.c.l.b16 %v1090
    %v1414 = vunpack.c.h.b16 %v1090
    %v1415 = vunpack.c.l.b16 %v1091
    %v1416 = vunpack.c.h.b16 %v1091
    %v1417 = vunpack.c.l.b16 %v1092
    %v1418 = vunpack.c.h.b16 %v1092
    %v1419 = vunpack.c.l.b16 %v1093
    %v1420 = vunpack.c.h.b16 %v1093
    %v1421 = vunpack.c.l.b16 %v1094
    %v1422 = vunpack.c.h.b16 %v1094
    %v1423 = vunpack.c.l.b16 %v1095
    %v1424 = vunpack.c.h.b16 %v1095
    %v1425 = vunpack.c.l.b16 %v1096
    %v1426 = vunpack.c.h.b16 %v1096
    %v1427 = vunpack.c.l.b16 %v1097
    %v1428 = vunpack.c.h.b16 %v1097
    %v1429 = vunpack.c.l.b16 %v1098
    %v1430 = vunpack.c.h.b16 %v1098
    %v1431 = vunpack.c.l.b16 %v1099
    %v1432 = vunpack.c.h.b16 %v1099
    %v1433 = vunpack.c.l.b16 %v1100
    %v1434 = vunpack.c.h.b16 %v1100
    %v1435 = vunpack.c.l.b16 %v1101
    %v1436 = vunpack.c.h.b16 %v1101
    %v1437 = vunpack.c.l.b16 %v1102
    %v1438 = vunpack.c.h.b16 %v1102
    %v1439 = vunpack.c.l.b16 %v1103
    %v1440 = vunpack.c.h.b16 %v1103
    %v1441 = vunpack.c.l.b16 %v1104
    %v1442 = vunpack.c.h.b16 %v1104
    %v1443 = vunpack.c.l.b16 %v1105
    %v1444 = vunpack.c.h.b16 %v1105
    %v1445 = vunpack.c.l.b16 %v1106
    %v1446 = vunpack.c.h.b16 %v1106
    %v1447 = vunpack.c.l.b16 %v1107
    %v1448 = vunpack.c.h.b16 %v1107
    %v1449 = vunpack.c.l.b16 %v1108
    %v1450 = vunpack.c.h.b16 %v1108
    %v1451 = vunpack.c.l.b16 %v1109
    %v1452 = vunpack.c.h.b16 %v1109
    %v1453 = vunpack.c.l.b16 %v1110
    %v1454 = vunpack.c.h.b16 %v1110
    %v1455 = vunpack.c.l.b16 %v1111
    %v1456 = vunpack.c.h.b16 %v1111
    %v1457 = vunpack.c.l.b16 %v1112
    %v1458 = vunpack.c.h.b16 %v1112
    %v1459 = vunpack.c.l.b16 %v1113
    %v1460 = vunpack.c.h.b16 %v1113
    %v1461 = vunpack.c.l.b16 %v1114
    %v1462 = vunpack.c.h.b16 %v1114
    %v1463 = vunpack.c.l.b16 %v1115
    %v1464 = vunpack.c.h.b16 %v1115
    %v1465 = vunpack.c.l.b16 %v1116
    %v1466 = vunpack.c.h.b16 %v1116
    %v1467 = vunpack.c.l.b16 %v1117
    %v1468 = vunpack.c.h.b16 %v1117
    %v1469 = vunpack.c.l.b16 %v1118
    %v1470 = vunpack.c.h.b16 %v1118
    %v1471 = vunpack.c.l.b16 %v1119
    %v1472 = vunpack.c.h.b16 %v1119
    %v1473 = vunpack.c.l.b16 %v1120
    %v1474 = vunpack.c.h.b16 %v1120
    %v1475 = vunpack.c.l.b16 %v1121
    %v1476 = vunpack.c.h.b16 %v1121
    %v1477 = vunpack.c.l.b16 %v1122
    %v1478 = vunpack.c.h.b16 %v1122
    %v1479 = vunpack.c.l.b16 %v1123
    %v1480 = vunpack.c.h.b16 %v1123
    %v1481 = vunpack.c.l.b16 %v1124
    %v1482 = vunpack.c.h.b16 %v1124
    %v1483 = vunpack.c.l.b16 %v1125
    %v1484 = vunpack.c.h.b16 %v1125
    %v1485 = vunpack.c.l.b16 %v1126
    %v1486 = vunpack.c.h.b16 %v1126
    %v1487 = vunpack.c.l.b16 %v1127
    %v1488 = vunpack.c.h.b16 %v1127
    %v1489 = vunpack.c.l.b16 %v1128
    %v1490 = vunpack.c.h.b16 %v1128
    %v1491 = vunpack.c.l.b16 %v1129
    %v1492 = vunpack.c.h.b16 %v1129
    %v1493 = vunpack.c.l.b16 %v1130
    %v1494 = vunpack.c.h.b16 %v1130
    %v1495 = vunpack.c.l.b16 %v1131
    %v1496 = vunpack.c.h.b16 %v1131
    %v1497 = vunpack.c.l.b16 %v1132
    %v1498 = vunpack.c.h.b16 %v1132
    %v1499 = vunpack.c.l.b16 %v1133
    %v1500 = vunpack.c.h.b16 %v1133
    %v1501 = vunpack.c.l.b16 %v1134
    %v1502 = vunpack.c.h.b16 %v1134
    %v1503 = vunpack.c.l.b16 %v1135
    %v1504 = vunpack.c.h.b16 %v1135
    %v1505 = vunpack.c.l.b16 %v1136
    %v1506 = vunpack.c.h.b16 %v1136
    %v1507 = vunpack.c.l.b16 %v1137
    %v1508 = vunpack.c.h.b16 %v1137
    %v1509 = vunpack.c.l.b16 %v1138
    %v1510 = vunpack.c.h.b16 %v1138
    %v1511 = vunpack.c.l.b16 %v1139
    %v1512 = vunpack.c.h.b16 %v1139
    %v1513 = vunpack.c.l.b16 %v1140
    %v1514 = vunpack.c.h.b16 %v1140
    %v1515 = vunpack.c.l.b16 %v1141
    %v1516 = vunpack.c.h.b16 %v1141
    %v1517 = vunpack.c.l.b16 %v1142
    %v1518 = vunpack.c.h.b16 %v1142
    %v1519 = vunpack.c.l.b16 %v1143
    %v1520 = vunpack.c.h.b16 %v1143
    %v1521 = vunpack.c.l.b16 %v1144
    %v1522 = vunpack.c.h.b16 %v1144
    %v1523 = vunpack.c.l.b16 %v1145
    %v1524 = vunpack.c.h.b16 %v1145
    %v1525 = vunpack.c.l.b16 %v1146
    %v1526 = vunpack.c.h.b16 %v1146
    %v1527 = vunpack.c.l.b16 %v1147
    %v1528 = vunpack.c.h.b16 %v1147
    %v1529 = vunpack.c.l.b16 %v1148
    %v1530 = vunpack.c.h.b16 %v1148
    %v1531 = vunpack.c.l.b16 %v1149
    %v1532 = vunpack.c.h.b16 %v1149
    %v1533 = vunpack.c.l.b16 %v1150
    %v1534 = vunpack.c.h.b16 %v1150
    %v1535 = vunpack.c.l.b16 %v1151
    %v1536 = vunpack.c.h.b16 %v1151
    %v1537 = vunpack.c.l.b16 %v1152
    %v1538 = vunpack.c.h.b16 %v1152
    %v1539 = vunpack.c.l.b16 %v1153
    %v1540 = vunpack.c.h.b16 %v1153
    %v1541 = vunpack.c.l.b16 %v1154
    %v1542 = vunpack.c.h.b16 %v1154
    %v1543 = vunpack.c.l.b16 %v1155
    %v1544 = vunpack.c.h.b16 %v1155
    %v1545 = vunpack.c.l.b16 %v1156
    %v1546 = vunpack.c.h.b16 %v1156
    %v1547 = vunpack.c.l.b16 %v1157
    %v1548 = vunpack.c.h.b16 %v1157
    %v1549 = vunpack.c.l.b16 %v1158
    %v1550 = vunpack.c.h.b16 %v1158
    %v1551 = vunpack.c.l.b16 %v1159
    %v1552 = vunpack.c.h.b16 %v1159
    %v1553 = vunpack.c.l.b16 %v1160
    %v1554 = vunpack.c.h.b16 %v1160
    %v1555 = vunpack.c.l.b16 %v1161
    %v1556 = vunpack.c.h.b16 %v1161
    %v1557 = vunpack.c.l.b16 %v1162
    %v1558 = vunpack.c.h.b16 %v1162
    %v1559 = vunpack.c.l.b16 %v1163
    %v1560 = vunpack.c.h.b16 %v1163
    %v1561 = vunpack.c.l.b16 %v1164
    %v1562 = vunpack.c.h.b16 %v1164
    %v1563 = vunpack.c.l.b16 %v1165
    %v1564 = vunpack.c.h.b16 %v1165
    %v1565 = vunpack.c.l.b16 %v1166
    %v1566 = vunpack.c.h.b16 %v1166
    %v1567 = vunpack.c.l.b16 %v1167
    %v1568 = vunpack.c.h.b16 %v1167
    %v1569 = vunpack.c.l.b16 %v1168
    %v1570 = vunpack.c.h.b16 %v1168
    %v1571 = vunpack.c.l.b16 %v1169
    %v1572 = vunpack.c.h.b16 %v1169
    %v1573 = vunpack.c.l.b16 %v1170
    %v1574 = vunpack.c.h.b16 %v1170
    %v1575 = vunpack.c.l.b16 %v1171
    %v1576 = vunpack.c.h.b16 %v1171
    %v1577 = vunpack.c.l.b16 %v1172
    %v1578 = vunpack.c.h.b16 %v1172
    %v1579 = vpack.c.b16 %v1327, %v1323
    %v1580 = vpack.c.b16 %v1328, %v1324
    %v1581 = vpack.c.b16 %v1329, %v1325
    %v1582 = vpack.c.b16 %v1330, %v1326
    %v1583 = vpack.c.b16 %v1335, %v1331
    %v1584 = vpack.c.b16 %v1336, %v1332
    %v1585 = vpack.c.b16 %v1337, %v1333
    %v1586 = vpack.c.b16 %v1338, %v1334
    %v1587 = vpack.c.b16 %v1343, %v1339
    %v1588 = vpack.c.b16 %v1344, %v1340
    %v1589 = vpack.c.b16 %v1345, %v1341
    %v1590 = vpack.c.b16 %v1346, %v1342
    %v1591 = vpack.c.b16 %v1351, %v1347
    %v1592 = vpack.c.b16 %v1352, %v1348
    %v1593 = vpack.c.b16 %v1353, %v1349
    %v1594 = vpack.c.b16 %v1354, %v1350
    %v1595 = vpack.c.b16 %v1359, %v1355
    %v1596 = vpack.c.b16 %v1360, %v1356
    %v1597 = vpack.c.b16 %v1361, %v1357
    %v1598 = vpack.c.b16 %v1362, %v1358
    %v1599 = vpack.c.b16 %v1367, %v1363
    %v1600 = vpack.c.b16 %v1368, %v1364
    %v1601 = vpack.c.b16 %v1369, %v1365
    %v1602 = vpack.c.b16 %v1370, %v1366
    %v1603 = vpack.c.b16 %v1375, %v1371
    %v1604 = vpack.c.b16 %v1376, %v1372
    %v1605 = vpack.c.b16 %v1377, %v1373
    %v1606 = vpack.c.b16 %v1378, %v1374
    %v1607 = vpack.c.b16 %v1383, %v1379
    %v1608 = vpack.c.b16 %v1384, %v1380
    %v1609 = vpack.c.b16 %v1385, %v1381
    %v1610 = vpack.c.b16 %v1386, %v1382
    %v1611 = vpack.c.b16 %v1391, %v1387
    %v1612 = vpack.c.b16 %v1392, %v1388
    %v1613 = vpack.c.b16 %v1393, %v1389
    %v1614 = vpack.c.b16 %v1394, %v1390
    %v1615 = vpack.c.b16 %v1399, %v1395
    %v1616 = vpack.c.b16 %v1400, %v1396
    %v1617 = vpack.c.b16 %v1401, %v1397
    %v1618 = vpack.c.b16 %v1402, %v1398
    %v1619 = vpack.c.b16 %v1407, %v1403
    %v1620 = vpack.c.b16 %v1408, %v1404
    %v1621 = vpack.c.b16 %v1409, %v1405
    %v1622 = vpack.c.b16 %v1410, %v1406
    %v1623 = vpack.c.b16 %v1415, %v1411
    %v1624 = vpack.c.b16 %v1416, %v1412
    %v1625 = vpack.c.b16 %v1417, %v1413
    %v1626 = vpack.c.b16 %v1418, %v1414
    %v1627 = vpack.c.b16 %v1423, %v1419
    %v1628 = vpack.c.b16 %v1424, %v1420
    %v1629 = vpack.c.b16 %v1425, %v1421
    %v1630 = vpack.c.b16 %v1426, %v1422
    %v1631 = vpack.c.b16 %v1431, %v1427
    %v1632 = vpack.c.b16 %v1432, %v1428
    %v1633 = vpack.c.b16 %v1433, %v1429
    %v1634 = vpack.c.b16 %v1434, %v1430
    %v1635 = vpack.c.b16 %v1439, %v1435
    %v1636 = vpack.c.b16 %v1440, %v1436
    %v1637 = vpack.c.b16 %v1441, %v1437
    %v1638 = vpack.c.b16 %v1442, %v1438
    %v1639 = vpack.c.b16 %v1447, %v1443
    %v1640 = vpack.c.b16 %v1448, %v1444
    %v1641 = vpack.c.b16 %v1449, %v1445
    %v1642 = vpack.c.b16 %v1450, %v1446
    %v1643 = vpack.c.b16 %v1455, %v1451
    %v1644 = vpack.c.b16 %v1456, %v1452
    %v1645 = vpack.c.b16 %v1457, %v1453
    %v1646 = vpack.c.b16 %v1458, %v1454
    %v1647 = vpack.c.b16 %v1463, %v1459
    %v1648 = vpack.c.b16 %v1464, %v1460
    %v1649 = vpack.c.b16 %v1465, %v1461
    %v1650 = vpack.c.b16 %v1466, %v1462
    %v1651 = vpack.c.b16 %v1471, %v1467
    %v1652 = vpack.c.b16 %v1472, %v1468
    %v1653 = vpack.c.b16 %v1473, %v1469
    %v1654 = vpack.c.b16 %v1474, %v1470
    %v1655 = vpack.c.b16 %v1479, %v1475
    %v1656 = vpack.c.b16 %v1480, %v1476
    %v1657 = vpack.c.b16 %v1481, %v1477
    %v1658 = vpack.c.b16 %v1482, %v1478
    %v1659 = vpack.c.b16 %v1487, %v1483
    %v1660 = vpack.c.b16 %v1488, %v1484
    %v1661 = vpack.c.b16 %v1489, %v1485
    %v1662 = vpack.c.b16 %v1490, %v1486
    %v1663 = vpack.c.b16 %v1495, %v1491
    %v1664 = vpack.c.b16 %v1496, %v1492
    %v1665 = vpack.c.b16 %v1497, %v1493
    %v1666 = vpack.c.b16 %v1498, %v1494
    %v1667 = vpack.c.b16 %v1503, %v1499
    %v1668 = vpack.c.b16 %v1504, %v1500
    %v1669 = vpack.c.b16 %v1505, %v1501
    %v1670 = vpack.c.b16 %v1506, %v1502
    %v1671 = vpack.c.b16 %v1511, %v1507
    %v1672 = vpack.c.b16 %v1512, %v1508
    %v1673 = vpack.c.b16 %v1513, %v1509
    %v1674 = vpack.c.b16 %v1514, %v1510
    %v1675 = vpack.c.b16 %v1519, %v1515
    %v1676 = vpack.c.b16 %v1520, %v1516
    %v1677 = vpack.c.b16 %v1521, %v1517
    %v1678 = vpack.c.b16 %v1522, %v1518
    %v1679 = vpack.c.b16 %v1527, %v1523
    %v1680 = vpack.c.b16 %v1528, %v1524
    %v1681 = vpack.c.b16 %v1529, %v1525
    %v1682 = vpack.c.b16 %v1530, %v1526
    %v1683 = vpack.c.b16 %v1535, %v1531
    %v1684 = vpack.c.b16 %v1536, %v1532
    %v1685 = vpack.c.b16 %v1537, %v1533
    %v1686 = vpack.c.b16 %v1538, %v1534
    %v1687 = vpack.c.b16 %v1543, %v1539
    %v1688 = vpack.c.b16 %v1544, %v1540
    %v1689 = vpack.c.b16 %v1545, %v1541
    %v1690 = vpack.c.b16 %v1546, %v1542
    %v1691 = vpack.c.b16 %v1551, %v1547
    %v1692 = vpack.c.b16 %v1552, %v1548
    %v1693 = vpack.c.b16 %v1553, %v1549
    %v1694 = vpack.c.b16 %v1554, %v1550
    %v1695 = vpack.c.b16 %v1559, %v1555
    %v1696 = vpack.c.b16 %v1560, %v1556
    %v1697 = vpack.c.b16 %v1561, %v1557
    %v1698 = vpack.c.b16 %v1562, %v1558
    %v1699 = vpack.c.b16 %v1567, %v1563
    %v1700 = vpack.c.b16 %v1568, %v1564
    %v1701 = vpack.c.b16 %v1569, %v1565
    %v1702 = vpack.c.b16 %v1570, %v1566
    %v1703 = vpack.c.b16 %v1575, %v1571
    %v1704 = vpack.c.b16 %v1576, %v1572
    %v1705 = vpack.c.b16 %v1577, %v1573
    %v1706 = vpack.c.b16 %v1578, %v1574
    %1835 = vmatprep.subr.bf16.mxu0 %v1580
    %1836 = vmatpush1.bf16.msra.mxu0 %v1579
    %1837 = vmatprep.subr.bf16.mxu0 %v1584
    %1838 = vmatpush1.bf16.msra.mxu0 %v1583
    %1839 = vmatprep.subr.bf16.mxu0 %v1588
    %1840 = vmatpush1.bf16.msra.mxu0 %v1587
    %1841 = vmatprep.subr.bf16.mxu0 %v1592
    %1842 = vmatpush1.bf16.msra.mxu0 %v1591
    %1843 = vmatprep.subr.bf16.mxu0 %v1596
    %1844 = vmatpush1.bf16.msra.mxu0 %v1595
    %1845 = vmatprep.subr.bf16.mxu0 %v1600
    %1846 = vmatpush1.bf16.msra.mxu0 %v1599
    %1847 = vmatprep.subr.bf16.mxu0 %v1604
    %1848 = vmatpush1.bf16.msra.mxu0 %v1603
    %1849 = vmatprep.subr.bf16.mxu0 %v1608
    %1850 = vmatpush1.bf16.msra.mxu0 %v1607
    %1851 = vmatprep.subr.bf16.mxu0 %v1612
    %1852 = vmatpush1.bf16.msra.mxu0 %v1611
    %1853 = vmatprep.subr.bf16.mxu0 %v1616
    %1854 = vmatpush1.bf16.msra.mxu0 %v1615
    %1855 = vmatprep.subr.bf16.mxu0 %v1620
    %1856 = vmatpush1.bf16.msra.mxu0 %v1619
    %1857 = vmatprep.subr.bf16.mxu0 %v1624
    %1858 = vmatpush1.bf16.msra.mxu0 %v1623
    %1859 = vmatprep.subr.bf16.mxu0 %v1628
    %1860 = vmatpush1.bf16.msra.mxu0 %v1627
    %1861 = vmatprep.subr.bf16.mxu0 %v1632
    %1862 = vmatpush1.bf16.msra.mxu0 %v1631
    %1863 = vmatprep.subr.bf16.mxu0 %v1636
    %1864 = vmatpush1.bf16.msra.mxu0 %v1635
    %1865 = vmatprep.subr.bf16.mxu0 %v1640
    %1866 = vmatpush1.bf16.msra.mxu0 %v1639
    %1867 = vmatprep.mubr.bf16.mxu0 %v1042
    %1868 = vmatmul.mubr.bf16.gmra.mrb[0].mxu0 %v1041
    %v1869 = vpop.f32.mrb[0].mxu0
    %v1870 = vadd.f32 %v1178, %v1869
    %v1871 = vpop.f32.mrb[0].mxu0
    %v1872 = vadd.f32 %v1182, %v1871
    %v1873 = vpop.f32.mrb[0].mxu0
    %v1874 = vpop.f32.mrb[0].mxu0
    %1875 = vdwg.mxu0
    %1876 = vmatprep.subr.bf16.mxu0 %v1644
    %1877 = vmatpush1.bf16.msra.mxu0 %v1643
    %1878 = vmatprep.subr.bf16.mxu0 %v1648
    %1879 = vmatpush1.bf16.msra.mxu0 %v1647
    %1880 = vmatprep.subr.bf16.mxu0 %v1652
    %1881 = vmatpush1.bf16.msra.mxu0 %v1651
    %1882 = vmatprep.subr.bf16.mxu0 %v1656
    %1883 = vmatpush1.bf16.msra.mxu0 %v1655
    %1884 = vmatprep.subr.bf16.mxu0 %v1660
    %1885 = vmatpush1.bf16.msra.mxu0 %v1659
    %1886 = vmatprep.subr.bf16.mxu0 %v1664
    %1887 = vmatpush1.bf16.msra.mxu0 %v1663
    %1888 = vmatprep.subr.bf16.mxu0 %v1668
    %1889 = vmatpush1.bf16.msra.mxu0 %v1667
    %1890 = vmatprep.subr.bf16.mxu0 %v1672
    %1891 = vmatpush1.bf16.msra.mxu0 %v1671
    %1892 = vmatprep.subr.bf16.mxu0 %v1676
    %1893 = vmatpush1.bf16.msra.mxu0 %v1675
    %1894 = vmatprep.subr.bf16.mxu0 %v1680
    %1895 = vmatpush1.bf16.msra.mxu0 %v1679
    %1896 = vmatprep.subr.bf16.mxu0 %v1684
    %1897 = vmatpush1.bf16.msra.mxu0 %v1683
    %1898 = vmatprep.subr.bf16.mxu0 %v1688
    %1899 = vmatpush1.bf16.msra.mxu0 %v1687
    %1900 = vmatprep.subr.bf16.mxu0 %v1692
    %1901 = vmatpush1.bf16.msra.mxu0 %v1691
    %1902 = vmatprep.subr.bf16.mxu0 %v1696
    %1903 = vmatpush1.bf16.msra.mxu0 %v1695
    %1904 = vmatprep.subr.bf16.mxu0 %v1700
    %1905 = vmatpush1.bf16.msra.mxu0 %v1699
    %1906 = vmatprep.subr.bf16.mxu0 %v1704
    %1907 = vmatpush1.bf16.msra.mxu0 %v1703
    %1908 = vmatprep.mubr.bf16.mxu0 %v1044
    %1909 = vmatmul.mubr.bf16.gmra.mrb[0].mxu0 %v1043
    %v1910 = vpop.f32.mrb[0].mxu0
    %v1911 = vadd.f32 %v1870, %v1910
    %v1912 = vpop.f32.mrb[0].mxu0
    %v1913 = vadd.f32 %v1872, %v1912
    %v1914 = vpop.f32.mrb[0].mxu0
    %v1915 = vpop.f32.mrb[0].mxu0
    %1916 = vdwg.mxu0
    %1917 = vmatprep.subr.bf16.mxu0 %v1582
    %1918 = vmatpush1.bf16.msra.mxu0 %v1581
    %1919 = vmatprep.subr.bf16.mxu0 %v1586
    %1920 = vmatpush1.bf16.msra.mxu0 %v1585
    %1921 = vmatprep.subr.bf16.mxu0 %v1590
    %1922 = vmatpush1.bf16.msra.mxu0 %v1589
    %1923 = vmatprep.subr.bf16.mxu0 %v1594
    %1924 = vmatpush1.bf16.msra.mxu0 %v1593
    %1925 = vmatprep.subr.bf16.mxu0 %v1598
    %1926 = vmatpush1.bf16.msra.mxu0 %v1597
    %1927 = vmatprep.subr.bf16.mxu0 %v1602
    %1928 = vmatpush1.bf16.msra.mxu0 %v1601
    %1929 = vmatprep.subr.bf16.mxu0 %v1606
    %1930 = vmatpush1.bf16.msra.mxu0 %v1605
    %1931 = vmatprep.subr.bf16.mxu0 %v1610
    %1932 = vmatpush1.bf16.msra.mxu0 %v1609
    %1933 = vmatprep.subr.bf16.mxu0 %v1614
    %1934 = vmatpush1.bf16.msra.mxu0 %v1613
    %1935 = vmatprep.subr.bf16.mxu0 %v1618
    %1936 = vmatpush1.bf16.msra.mxu0 %v1617
    %1937 = vmatprep.subr.bf16.mxu0 %v1622
    %1938 = vmatpush1.bf16.msra.mxu0 %v1621
    %1939 = vmatprep.subr.bf16.mxu0 %v1626
    %1940 = vmatpush1.bf16.msra.mxu0 %v1625
    %1941 = vmatprep.subr.bf16.mxu0 %v1630
    %1942 = vmatpush1.bf16.msra.mxu0 %v1629
    %1943 = vmatprep.subr.bf16.mxu0 %v1634
    %1944 = vmatpush1.bf16.msra.mxu0 %v1633
    %1945 = vmatprep.subr.bf16.mxu0 %v1638
    %1946 = vmatpush1.bf16.msra.mxu0 %v1637
    %1947 = vmatprep.subr.bf16.mxu0 %v1642
    %1948 = vmatpush1.bf16.msra.mxu0 %v1641
    %1949 = vmatprep.mubr.bf16.mxu0 %v1042
    %1950 = vmatmul.mubr.bf16.gmra.mrb[0].mxu0 %v1041
    %v1951 = vpop.f32.mrb[0].mxu0
    %v1952 = vadd.f32 %v1186, %v1951
    %v1953 = vpop.f32.mrb[0].mxu0
    %v1954 = vadd.f32 %v1190, %v1953
    %v1955 = vpop.f32.mrb[0].mxu0
    %v1956 = vpop.f32.mrb[0].mxu0
    %1957 = vdwg.mxu0
    %1958 = vmatprep.subr.bf16.mxu0 %v1646
    %1959 = vmatpush1.bf16.msra.mxu0 %v1645
    %1960 = vmatprep.subr.bf16.mxu0 %v1650
    %1961 = vmatpush1.bf16.msra.mxu0 %v1649
    %1962 = vmatprep.subr.bf16.mxu0 %v1654
    %1963 = vmatpush1.bf16.msra.mxu0 %v1653
    %1964 = vmatprep.subr.bf16.mxu0 %v1658
    %1965 = vmatpush1.bf16.msra.mxu0 %v1657
    %1966 = vmatprep.subr.bf16.mxu0 %v1662
    %1967 = vmatpush1.bf16.msra.mxu0 %v1661
    %1968 = vmatprep.subr.bf16.mxu0 %v1666
    %1969 = vmatpush1.bf16.msra.mxu0 %v1665
    %1970 = vmatprep.subr.bf16.mxu0 %v1670
    %1971 = vmatpush1.bf16.msra.mxu0 %v1669
    %1972 = vmatprep.subr.bf16.mxu0 %v1674
    %1973 = vmatpush1.bf16.msra.mxu0 %v1673
    %1974 = vmatprep.subr.bf16.mxu0 %v1678
    %1975 = vmatpush1.bf16.msra.mxu0 %v1677
    %1976 = vmatprep.subr.bf16.mxu0 %v1682
    %1977 = vmatpush1.bf16.msra.mxu0 %v1681
    %1978 = vmatprep.subr.bf16.mxu0 %v1686
    %1979 = vmatpush1.bf16.msra.mxu0 %v1685
    %1980 = vmatprep.subr.bf16.mxu0 %v1690
    %1981 = vmatpush1.bf16.msra.mxu0 %v1689
    %1982 = vmatprep.subr.bf16.mxu0 %v1694
    %1983 = vmatpush1.bf16.msra.mxu0 %v1693
    %1984 = vmatprep.subr.bf16.mxu0 %v1698
    %1985 = vmatpush1.bf16.msra.mxu0 %v1697
    %1986 = vmatprep.subr.bf16.mxu0 %v1702
    %1987 = vmatpush1.bf16.msra.mxu0 %v1701
    %1988 = vmatprep.subr.bf16.mxu0 %v1706
    %1989 = vmatpush1.bf16.msra.mxu0 %v1705
    %1990 = vmatprep.mubr.bf16.mxu0 %v1044
    %1991 = vmatmul.mubr.bf16.gmra.mrb[0].mxu0 %v1043
    %v1992 = vpop.f32.mrb[0].mxu0
    %v1993 = vadd.f32 %v1952, %v1992
    %v1994 = vpop.f32.mrb[0].mxu0
    %v1995 = vadd.f32 %v1954, %v1994
    %v1996 = vpop.f32.mrb[0].mxu0
    %v1997 = vpop.f32.mrb[0].mxu0
    %1998 = vdwg.mxu0
    %v1999 = vtanh.pop %v1911
    %v2000 = vtanh.pop %v1913
    %v2001 = vtanh.pop %v1993
    %v2002 = vtanh.pop %v1995
    %2003 = vst [vmem:[#allocation8] sm:$0xff] %v1999
    %2004 = vst [vmem:[#allocation8 + $0x8] sm:$0xff] %v2000
    %2005 = vst [vmem:[#allocation8 + $0x10] sm:$0xff] %v2001
    %2006 = vst [vmem:[#allocation8 + $0x18] sm:$0xff] %v2002
    // Predicated region
    $region34: #{tpu_custom_call.1} parent=1 // pred_check
      _
    $region35: #{tpu_custom_call.1} parent=1 // pred_check_branch
      %2008 = sbr.rel (0) target = $region37
    $region36: #{tpu_custom_call.1} parent=1 // pred_region
      %s2010 = ssub.s32 512, 512
      %2011 = vsyncadd [#allocation4], %s2010
      %s2013 = sshll.u32 [#allocation8], 4
      %s2014 = int_to_ptr.vmem [resolvable:$true] %s2013
      %2016 = dma.vmem_to_hbm [thread:$0]  %s2014, 512, %s5, [#allocation4]
    $region37: #{tpu_custom_call.1} parent=1 // pred_fallthru
      _
    // Predicated region
    $region38: #{tpu_custom_call.1} parent=1 // pred_check
      _
    $region39: #{tpu_custom_call.1} parent=1 // pred_check_branch
      %2018 = sbr.rel (0) target = $region41
    $region40: #{tpu_custom_call.1} parent=1 // pred_region
      %2019 = dma.done [#allocation4], 512
    $region41: #{tpu_custom_call.1} parent=1 // pred_fallthru
      _
    %2020 = vsyncpa [#allocation3], 1
    %2021 = vsyncpa [#allocation6], 1
    %2022 = vsyncpa [#allocation4], 1

</llo_original>
